<compile_context>
chip_gen: v5e
topology: v5e:2x2
jax: 0.10.0
libtpu: 0.0.40
codegen_flags: <defaults>
</compile_context>

<pallas_src>
import jax
import jax.numpy as jnp
from jax.experimental import pallas as pl
from jax.experimental.pallas import tpu as pltpu


def _round_up(x, m):
    return ((x + m - 1) // m) * m


def _tensorcores_per_device():
    """2 for chips exposing two TensorCores per JAX device (v7x/v5p/v4), else 1."""
    try:
        kind = jax.devices()[0].device_kind.lower()
    except Exception:
        return 1
    if "v7" in kind:
        return 2
    if "v5p" in kind:
        return 2
    if "v4" in kind and "lite" not in kind:
        return 2
    return 1  # v5e / v6e: single TensorCore -> never split the batch across the grid


def _vmem_capacity_bytes():
    try:
        return int(pltpu.get_tpu_info().vmem_capacity_bytes)
    except Exception:
        return 64 * 1024 * 1024  # conservative fallback (v7x per-core VMEM)


def _pick_chunk_steps(S, BB, I, H, vmem_cap, mm_bytes, max_chunk_steps):
    # Per-timestep VMEM inside one chunk:
    #   x chunks : 2 directions x double-buffered x BB*I*mm_bytes
    #   gi slabs : 2 directions x 3 gates x BB*H*4 (f32)
    per_t = 2 * 2 * BB * I * mm_bytes + 2 * 3 * BB * H * 4
    budget = max(vmem_cap // 4, 2 * 1024 * 1024)
    T = max(1, min(S, budget // max(per_t, 1)))
    T = min(T, 64)  # bound the unrolled program size / vreg pressure per chunk
    if max_chunk_steps is not None:
        T = max(1, min(T, int(max_chunk_steps)))
    return int(T)


def _make_bigru_kernel(T, nchunks, H, pad_steps):
    last_c = nchunks - 1
    f32 = jnp.float32

    def kernel(xf_ref, xb_ref, wif_ref, wib_ref, bif_ref, bib_ref,
               whf_ref, whb_ref, bhnf_ref, bhnb_ref, out_ref, hf_ref, hb_ref):
        c = pl.program_id(1)
        BB = xf_ref.shape[1]
        I = xf_ref.shape[2]

        # Zero the carried hidden states at the first time chunk of every batch block.
        @pl.when(c == 0)
        def _():
            hf_ref[...] = jnp.zeros_like(hf_ref)
            hb_ref[...] = jnp.zeros_like(hb_ref)

        # --- Input-path projections for this chunk: one MXU matmul per direction ---
        # (hoisted off the serial recurrence; b_hr / b_hz already folded into b_in).
        def proj(x_ref, w_ref, b_ref):
            x2d = x_ref[...].reshape(T * BB, I)
            gi = jnp.dot(x2d, w_ref[...], preferred_element_type=f32) + b_ref[...]
            gi = gi.reshape(T, BB, 3 * H)  # time-major: gi[t] is a free static slice
            # Split per gate once per chunk (amortized over the T unrolled steps).
            return gi[:, :, 0:H], gi[:, :, H:2 * H], gi[:, :, 2 * H:3 * H]

        gif_r, gif_z, gif_n = proj(xf_ref, wif_ref, bif_ref)
        gib_r, gib_z, gib_n = proj(xb_ref, wib_ref, bib_ref)

        w_hh_f = whf_ref[...]
        w_hh_b = whb_ref[...]
        mm_dtype = w_hh_f.dtype
        # Hoist the remaining bias broadcasts out of the unrolled recurrence.
        bhn_f = jnp.broadcast_to(bhnf_ref[...], (BB, H)).astype(f32)
        bhn_b = jnp.broadcast_to(bhnb_ref[...], (BB, H)).astype(f32)

        def cell(gr, gz, gn, h_prev, w_hh, bhn):
            # One fused (r,z,n) recurrent matmul per direction per step; operands may
            # be bf16, accumulation and gate math stay f32 (PyTorch GRU gate order).
            gh = jnp.dot(h_prev.astype(mm_dtype), w_hh, preferred_element_type=f32)
            r = jax.nn.sigmoid(gr + gh[:, 0:H])
            z = jax.nn.sigmoid(gz + gh[:, H:2 * H])
            n = jnp.tanh(gn + r * (gh[:, 2 * H:3 * H] + bhn))
            return (1.0 - z) * n + z * h_prev

        h_f = hf_ref[...]
        h_b = hb_ref[...]

        # Recurrence over this chunk, fully unrolled (T is bounded by the chunker).
        for t in range(T):
            # Forward direction: global time c*T + t.
            h_f_new = cell(gif_r[t], gif_z[t], gif_n[t], h_f, w_hh_f, bhn_f)
            if pad_steps and t >= T - pad_steps:
                # Zero-padded timesteps only exist in the last chunk; skip them there.
                keep = (c < last_c).astype(f32)
                h_f = keep * h_f_new + (1.0 - keep) * h_f
            else:
                h_f = h_f_new
            # Backward direction: global time (nchunks-1-c)*T + (T-1-t).
            tb = T - 1 - t
            h_b_new = cell(gib_r[tb], gib_z[tb], gib_n[tb], h_b, w_hh_b, bhn_b)
            if pad_steps and tb >= T - pad_steps:
                keep = (c > 0).astype(f32)
                h_b = keep * h_b_new + (1.0 - keep) * h_b
            else:
                h_b = h_b_new

        hf_ref[...] = h_f
        hb_ref[...] = h_b

        # Single lane-dense store of [h_fwd_final | h_bwd_final] on the last chunk.
        @pl.when(c == last_c)
        def _():
            out_ref[...] = jnp.concatenate([h_f, h_b], axis=-1).astype(out_ref.dtype)

    return kernel


def _pack_params(p, mm_dtype):
    """Fuse per-gate PyTorch-style params into lane-dense per-direction operands."""
    f32 = jnp.float32

    def pack_dir(wih, whh, bih, bhh):
        w_in = jnp.concatenate([wih[0], wih[1], wih[2]], axis=1).astype(mm_dtype)  # (I, 3H)
        w_hh = jnp.concatenate([whh[0], whh[1], whh[2]], axis=1).astype(mm_dtype)  # (H, 3H)
        # Fold b_hr, b_hz into the input-path bias; only b_hn must stay inside r*(.)
        b_in = jnp.concatenate([bih[0] + bhh[0], bih[1] + bhh[1], bih[2]],
                               axis=1).astype(f32)                                  # (1, 3H)
        b_hn = bhh[2].astype(f32)                                                   # (1, H)
        return w_in, w_hh, b_in, b_hn

    return (pack_dir(p["wih_f"], p["whh_f"], p["bih_f"], p["bhh_f"]),
            pack_dir(p["wih_b"], p["whh_b"], p["bih_b"], p["bhh_b"]))


def encoder_forward(x, params, *, matmul_dtype=jnp.bfloat16, max_chunk_steps=None):
    """x: (batch, seq, input_size) f32 (PyTorch batch_first) -> (batch, 2H) f32."""
    B, S, I = x.shape
    H = params["whh_f"].shape[2]
    mm_bytes = jnp.dtype(matmul_dtype).itemsize

    (w_in_f, w_hh_f, b_in_f, b_hn_f), (w_in_b, w_hh_b, b_in_b, b_hn_b) = \
        _pack_params(params, matmul_dtype)

    # Batch blocking: split across the grid only when a 2nd TensorCore exists AND the
    # per-core work is meaningful; otherwise one block (nb=1) — never split on v5e/v6e.
    B_pad = _round_up(B, 8)
    split = (_tensorcores_per_device() >= 2 and B_pad >= 16
             and (B_pad * S * max(I, 3 * H) >= (1 << 18)))
    if split:
        BB = _round_up(-(-B_pad // 2), 8)
        B_pad = 2 * BB
        nb = 2
    else:
        BB = B_pad
        nb = 1

    # Time chunking so x + gate pre-activations never have to be fully VMEM-resident.
    vmem_cap = _vmem_capacity_bytes()
    T = _pick_chunk_steps(S, BB, I, H, vmem_cap, mm_bytes, max_chunk_steps)
    nchunks = -(-S // T)
    S_pad = nchunks * T
    pad_steps = S_pad - S

    # Time-major, padded, matmul-dtype input (one-time wrapper transpose/pad).
    x_t = jnp.transpose(x, (1, 0, 2)).astype(matmul_dtype)        # (S, B, I)
    x_t = jnp.pad(x_t, ((0, S_pad - S), (0, B_pad - B), (0, 0)))  # (S_pad, B_pad, I)

    # VMEM budget hint: weights + biases + double-buffered x chunks + gi slabs
    # + output block + h scratch + temporaries headroom.
    est = (2 * (I * 3 * H + H * 3 * H) * mm_bytes
           + 2 * 4 * H * 4
           + 2 * 2 * T * BB * I * mm_bytes
           + 2 * 3 * T * BB * H * 4
           + 2 * BB * 2 * H * 4
           + 2 * BB * H * 4
           + 4 * BB * 3 * H * 4)
    vmem_limit = int(min(vmem_cap * 3 // 4, max(32 * 1024 * 1024, 2 * est)))

    kernel = _make_bigru_kernel(T=T, nchunks=nchunks, H=H, pad_steps=pad_steps)

    out = pl.pallas_call(
        kernel,
        out_shape=jax.ShapeDtypeStruct((B_pad, 2 * H), jnp.float32),
        grid=(nb, nchunks),
        in_specs=[
            pl.BlockSpec((T, BB, I), lambda i, c: (c, i, 0)),                # x fwd chunk
            pl.BlockSpec((T, BB, I), lambda i, c: (nchunks - 1 - c, i, 0)),  # x bwd chunk
            pl.BlockSpec((I, 3 * H), lambda i, c: (0, 0)),                   # w_in_f
            pl.BlockSpec((I, 3 * H), lambda i, c: (0, 0)),                   # w_in_b
            pl.BlockSpec((1, 3 * H), lambda i, c: (0, 0)),                   # b_in_f
            pl.BlockSpec((1, 3 * H), lambda i, c: (0, 0)),                   # b_in_b
            pl.BlockSpec((H, 3 * H), lambda i, c: (0, 0)),                   # w_hh_f
            pl.BlockSpec((H, 3 * H), lambda i, c: (0, 0)),                   # w_hh_b
            pl.BlockSpec((1, H), lambda i, c: (0, 0)),                       # b_hn_f
            pl.BlockSpec((1, H), lambda i, c: (0, 0)),                       # b_hn_b
        ],
        out_specs=pl.BlockSpec((BB, 2 * H), lambda i, c: (i, 0)),
        scratch_shapes=[pltpu.VMEM((BB, H), jnp.float32),   # h_f carry
                        pltpu.VMEM((BB, H), jnp.float32)],  # h_b carry
        compiler_params=pltpu.CompilerParams(
            dimension_semantics=("parallel", "arbitrary"),
            vmem_limit_bytes=vmem_limit),
    )(x_t, x_t, w_in_f, w_in_b, b_in_f, b_in_b, w_hh_f, w_hh_b, b_hn_f, b_hn_b)

    return out[:B]


def init_params(key, input_size, hidden_size):
    """Deterministic init mimicking PyTorch GRU: U(-1/sqrt(H), 1/sqrt(H))."""
    k = 1.0 / jnp.sqrt(jnp.float32(hidden_size))
    names_shapes = [
        ("wih_f", (3, input_size, hidden_size)),
        ("whh_f", (3, hidden_size, hidden_size)),
        ("bih_f", (3, 1, hidden_size)),
        ("bhh_f", (3, 1, hidden_size)),
        ("wih_b", (3, input_size, hidden_size)),
        ("whh_b", (3, hidden_size, hidden_size)),
        ("bih_b", (3, 1, hidden_size)),
        ("bhh_b", (3, 1, hidden_size)),
    ]
    params = {}
    keys = jax.random.split(key, len(names_shapes))
    for (name, shape), kk in zip(names_shapes, keys):
        params[name] = jax.random.uniform(kk, shape, jnp.float32, minval=-k, maxval=k)
    return params


def encoder_forward_ref(x, params):
    """Pure-JAX reference (no Pallas) for correctness checking."""
    def cell(x_t, h_prev, wih, whh, bih, bhh):
        gi = [x_t @ wih[g] + bih[g] for g in range(3)]
        gh = [h_prev @ whh[g] + bhh[g] for g in range(3)]
        r = jax.nn.sigmoid(gi[0] + gh[0])
        z = jax.nn.sigmoid(gi[1] + gh[1])
        n = jnp.tanh(gi[2] + r * gh[2])
        return (1.0 - z) * n + z * h_prev

    B, S, I = x.shape
    H = params["whh_f"].shape[2]
    h_f = jnp.zeros((B, H), jnp.float32)
    h_b = jnp.zeros((B, H), jnp.float32)
    for t in range(S):
        h_f = cell(x[:, t], h_f, params["wih_f"], params["whh_f"],
                   params["bih_f"], params["bhh_f"])
        h_b = cell(x[:, S - 1 - t], h_b, params["wih_b"], params["whh_b"],
                   params["bih_b"], params["bhh_b"])
    return jnp.concatenate([h_f, h_b], axis=-1)


if __name__ == "__main__":
    batch, seq, input_size, hidden_size = 2, 8, 16, 32
    key = jax.random.PRNGKey(0)
    k_x, k_p = jax.random.split(key)
    x = jax.random.normal(k_x, (batch, seq, input_size), jnp.float32)
    params = init_params(k_p, input_size, hidden_size)

    ref = jax.block_until_ready(encoder_forward_ref(x, params))

    # 1) f32 operands, natural (single) time chunk: tight check of the GRU math.
    out_a = jax.block_until_ready(encoder_forward(x, params, matmul_dtype=jnp.float32))
    assert out_a.shape == (batch, 2 * hidden_size), out_a.shape
    assert jnp.allclose(out_a, ref, rtol=1e-4, atol=1e-4), (
        f"f32 mismatch: max abs diff {jnp.max(jnp.abs(out_a - ref))}")

    # 2) f32 operands, forced multi-chunk pipeline (time padding + masked steps):
    #    tight check of the chunked-recurrence carry / masking machinery.
    out_b = jax.block_until_ready(
        encoder_forward(x, params, matmul_dtype=jnp.float32, max_chunk_steps=3))
    assert jnp.allclose(out_b, ref, rtol=1e-4, atol=1e-4), (
        f"chunked f32 mismatch: max abs diff {jnp.max(jnp.abs(out_b - ref))}")

    # 3) Default perf path: bf16 matmul operands, f32 accumulation/state.  Loose
    #    tolerance only covers bf16 operand rounding; exactness proven by (1)/(2).
    out_c = jax.block_until_ready(encoder_forward(x, params))
    assert jnp.allclose(out_c, ref, rtol=1e-1, atol=1e-1), (
        f"bf16 mismatch: max abs diff {jnp.max(jnp.abs(out_c - ref))}")

    print("KERNEL_OK")
</pallas_src>

<mosaic_0001>
module attributes {stable_mosaic.version = 11 : i64} {
  func.func @kernel(%arg0: i32, %arg1: i32, %arg2: memref<8x8x16xf32, #tpu.memory_space<vmem>>, %arg3: memref<8x8x16xf32, #tpu.memory_space<vmem>>, %arg4: memref<16x96xf32, #tpu.memory_space<vmem>>, %arg5: memref<16x96xf32, #tpu.memory_space<vmem>>, %arg6: memref<1x96xf32, #tpu.memory_space<vmem>>, %arg7: memref<1x96xf32, #tpu.memory_space<vmem>>, %arg8: memref<32x96xf32, #tpu.memory_space<vmem>>, %arg9: memref<32x96xf32, #tpu.memory_space<vmem>>, %arg10: memref<1x32xf32, #tpu.memory_space<vmem>>, %arg11: memref<1x32xf32, #tpu.memory_space<vmem>>, %arg12: memref<8x64xf32, #tpu.memory_space<vmem>>, %arg13: memref<8x32xf32, #tpu.memory_space<vmem>>, %arg14: memref<8x32xf32, #tpu.memory_space<vmem>>) attributes {dimension_semantics = [#tpu.dimension_semantics<parallel>, #tpu.dimension_semantics<arbitrary>], iteration_bounds = array<i64: 1, 1>, scalar_prefetch = 0 : i64, scratch_operands = 2 : i64, tpu.core_type = #tpu.core_type<tc>, window_params = [{transform_indices = @transform_0, window_bounds = array<i64: 8, 8, 16>}, {transform_indices = @transform_1, window_bounds = array<i64: 8, 8, 16>}, {pipeline_mode = #tpu.pipeline_mode<synchronous>, transform_indices = @transform_2, window_bounds = array<i64: 16, 96>}, {pipeline_mode = #tpu.pipeline_mode<synchronous>, transform_indices = @transform_3, window_bounds = array<i64: 16, 96>}, {pipeline_mode = #tpu.pipeline_mode<synchronous>, transform_indices = @transform_4, window_bounds = array<i64: 1, 96>}, {pipeline_mode = #tpu.pipeline_mode<synchronous>, transform_indices = @transform_5, window_bounds = array<i64: 1, 96>}, {pipeline_mode = #tpu.pipeline_mode<synchronous>, transform_indices = @transform_6, window_bounds = array<i64: 32, 96>}, {pipeline_mode = #tpu.pipeline_mode<synchronous>, transform_indices = @transform_7, window_bounds = array<i64: 32, 96>}, {pipeline_mode = #tpu.pipeline_mode<synchronous>, transform_indices = @transform_8, window_bounds = array<i64: 1, 32>}, {pipeline_mode = #tpu.pipeline_mode<synchronous>, transform_indices = @transform_9, window_bounds = array<i64: 1, 32>}, {transform_indices = @transform_10, window_bounds = array<i64: 8, 64>}]} {
    %c0_i32 = arith.constant 0 : i32
    %0 = arith.cmpi eq, %arg1, %c0_i32 : i32
    %1 = arith.extui %0 : i1 to i32
    %c0_i32_0 = arith.constant 0 : i32
    %2 = arith.cmpi ne, %1, %c0_i32_0 : i32
    scf.if %2 {
      %cst_97 = arith.constant 0.000000e+00 : f32
      %536 = vector.broadcast %cst_97 : f32 to vector<8x32xf32>
      %c0_98 = arith.constant 0 : index
      %c0_99 = arith.constant 0 : index
      %537 = vector.load %arg13[%c0_98, %c0_99] : memref<8x32xf32, #tpu.memory_space<vmem>>, vector<8x32xf32>
      tpu.vector_store %arg13[%c0_98, %c0_99], %536 {strides = array<i32>} : memref<8x32xf32, #tpu.memory_space<vmem>>, vector<8x32xf32>,
      %cst_100 = arith.constant 0.000000e+00 : f32
      %538 = vector.broadcast %cst_100 : f32 to vector<8x32xf32>
      %c0_101 = arith.constant 0 : index
      %c0_102 = arith.constant 0 : index
      %539 = vector.load %arg14[%c0_101, %c0_102] : memref<8x32xf32, #tpu.memory_space<vmem>>, vector<8x32xf32>
      tpu.vector_store %arg14[%c0_101, %c0_102], %538 {strides = array<i32>} : memref<8x32xf32, #tpu.memory_space<vmem>>, vector<8x32xf32>,
    } else {
    }
    %c0 = arith.constant 0 : index
    %c0_1 = arith.constant 0 : index
    %c0_2 = arith.constant 0 : index
    %3 = vector.load %arg2[%c0, %c0_1, %c0_2] : memref<8x8x16xf32, #tpu.memory_space<vmem>>, vector<8x8x16xf32>
    %4 = vector.shape_cast %3 : vector<8x8x16xf32> to vector<64x16xf32>
    %c0_3 = arith.constant 0 : index
    %c0_4 = arith.constant 0 : index
    %5 = vector.load %arg4[%c0_3, %c0_4] : memref<16x96xf32, #tpu.memory_space<vmem>>, vector<16x96xf32>
    %cst = arith.constant dense<0.000000e+00> : vector<64x96xf32>
    %6 = tpu.matmul %4, %5, %cst {dimension_numbers = #tpu.dot_dimension_numbers<[1], [0], [0], [1], [0, 0, 1, 1], [], []>} : vector<64x16xf32>, vector<16x96xf32>, vector<64x96xf32> -> vector<64x96xf32>
    %c0_5 = arith.constant 0 : index
    %c0_6 = arith.constant 0 : index
    %7 = vector.load %arg6[%c0_5, %c0_6] : memref<1x96xf32, #tpu.memory_space<vmem>>, vector<1x96xf32>
    %8 = vector.broadcast %7 : vector<1x96xf32> to vector<64x96xf32>
    %9 = arith.addf %6, %8 : vector<64x96xf32>
    %10 = vector.shape_cast %9 : vector<64x96xf32> to vector<8x8x96xf32>
    %11 = vector.extract_strided_slice %10 {offsets = [0, 0, 0], sizes = [8, 8, 32], strides = [1, 1, 1]} : vector<8x8x96xf32> to vector<8x8x32xf32>
    %12 = vector.extract_strided_slice %10 {offsets = [0, 0, 32], sizes = [8, 8, 32], strides = [1, 1, 1]} : vector<8x8x96xf32> to vector<8x8x32xf32>
    %13 = vector.extract_strided_slice %10 {offsets = [0, 0, 64], sizes = [8, 8, 32], strides = [1, 1, 1]} : vector<8x8x96xf32> to vector<8x8x32xf32>
    %c0_7 = arith.constant 0 : index
    %c0_8 = arith.constant 0 : index
    %c0_9 = arith.constant 0 : index
    %14 = vector.load %arg3[%c0_7, %c0_8, %c0_9] : memref<8x8x16xf32, #tpu.memory_space<vmem>>, vector<8x8x16xf32>
    %15 = vector.shape_cast %14 : vector<8x8x16xf32> to vector<64x16xf32>
    %c0_10 = arith.constant 0 : index
    %c0_11 = arith.constant 0 : index
    %16 = vector.load %arg5[%c0_10, %c0_11] : memref<16x96xf32, #tpu.memory_space<vmem>>, vector<16x96xf32>
    %cst_12 = arith.constant dense<0.000000e+00> : vector<64x96xf32>
    %17 = tpu.matmul %15, %16, %cst_12 {dimension_numbers = #tpu.dot_dimension_numbers<[1], [0], [0], [1], [0, 0, 1, 1], [], []>} : vector<64x16xf32>, vector<16x96xf32>, vector<64x96xf32> -> vector<64x96xf32>
    %c0_13 = arith.constant 0 : index
    %c0_14 = arith.constant 0 : index
    %18 = vector.load %arg7[%c0_13, %c0_14] : memref<1x96xf32, #tpu.memory_space<vmem>>, vector<1x96xf32>
    %19 = vector.broadcast %18 : vector<1x96xf32> to vector<64x96xf32>
    %20 = arith.addf %17, %19 : vector<64x96xf32>
    %21 = vector.shape_cast %20 : vector<64x96xf32> to vector<8x8x96xf32>
    %22 = vector.extract_strided_slice %21 {offsets = [0, 0, 0], sizes = [8, 8, 32], strides = [1, 1, 1]} : vector<8x8x96xf32> to vector<8x8x32xf32>
    %23 = vector.extract_strided_slice %21 {offsets = [0, 0, 32], sizes = [8, 8, 32], strides = [1, 1, 1]} : vector<8x8x96xf32> to vector<8x8x32xf32>
    %24 = vector.extract_strided_slice %21 {offsets = [0, 0, 64], sizes = [8, 8, 32], strides = [1, 1, 1]} : vector<8x8x96xf32> to vector<8x8x32xf32>
    %c0_15 = arith.constant 0 : index
    %c0_16 = arith.constant 0 : index
    %25 = vector.load %arg8[%c0_15, %c0_16] : memref<32x96xf32, #tpu.memory_space<vmem>>, vector<32x96xf32>
    %c0_17 = arith.constant 0 : index
    %c0_18 = arith.constant 0 : index
    %26 = vector.load %arg9[%c0_17, %c0_18] : memref<32x96xf32, #tpu.memory_space<vmem>>, vector<32x96xf32>
    %c0_19 = arith.constant 0 : index
    %c0_20 = arith.constant 0 : index
    %27 = vector.load %arg10[%c0_19, %c0_20] : memref<1x32xf32, #tpu.memory_space<vmem>>, vector<1x32xf32>
    %28 = vector.shape_cast %27 : vector<1x32xf32> to vector<1x32xf32>
    %29 = vector.broadcast %28 : vector<1x32xf32> to vector<8x32xf32>
    %c0_21 = arith.constant 0 : index
    %c0_22 = arith.constant 0 : index
    %30 = vector.load %arg11[%c0_21, %c0_22] : memref<1x32xf32, #tpu.memory_space<vmem>>, vector<1x32xf32>
    %31 = vector.shape_cast %30 : vector<1x32xf32> to vector<1x32xf32>
    %32 = vector.broadcast %31 : vector<1x32xf32> to vector<8x32xf32>
    %c0_23 = arith.constant 0 : index
    %c0_24 = arith.constant 0 : index
    %33 = vector.load %arg13[%c0_23, %c0_24] : memref<8x32xf32, #tpu.memory_space<vmem>>, vector<8x32xf32>
    %c0_25 = arith.constant 0 : index
    %c0_26 = arith.constant 0 : index
    %34 = vector.load %arg14[%c0_25, %c0_26] : memref<8x32xf32, #tpu.memory_space<vmem>>, vector<8x32xf32>
    %35 = vector.extract_strided_slice %11 {offsets = [0, 0, 0], sizes = [1, 8, 32], strides = [1, 1, 1]} : vector<8x8x32xf32> to vector<1x8x32xf32>
    %36 = vector.shape_cast %35 : vector<1x8x32xf32> to vector<8x32xf32>
    %37 = vector.extract_strided_slice %12 {offsets = [0, 0, 0], sizes = [1, 8, 32], strides = [1, 1, 1]} : vector<8x8x32xf32> to vector<1x8x32xf32>
    %38 = vector.shape_cast %37 : vector<1x8x32xf32> to vector<8x32xf32>
    %39 = vector.extract_strided_slice %13 {offsets = [0, 0, 0], sizes = [1, 8, 32], strides = [1, 1, 1]} : vector<8x8x32xf32> to vector<1x8x32xf32>
    %40 = vector.shape_cast %39 : vector<1x8x32xf32> to vector<8x32xf32>
    %cst_27 = arith.constant dense<0.000000e+00> : vector<8x96xf32>
    %41 = tpu.matmul %33, %25, %cst_27 {dimension_numbers = #tpu.dot_dimension_numbers<[1], [0], [0], [1], [0, 0, 1, 1], [], []>} : vector<8x32xf32>, vector<32x96xf32>, vector<8x96xf32> -> vector<8x96xf32>
    %42 = vector.extract_strided_slice %41 {offsets = [0, 0], sizes = [8, 32], strides = [1, 1]} : vector<8x96xf32> to vector<8x32xf32>
    %43 = arith.addf %36, %42 : vector<8x32xf32>
    %44 = arith.negf %43 : vector<8x32xf32>
    %45 = math.exp %44 : vector<8x32xf32>
    %cst_28 = arith.constant 1.000000e+00 : f32
    %46 = vector.broadcast %cst_28 : f32 to vector<8x32xf32>
    %47 = arith.addf %46, %45 : vector<8x32xf32>
    %48 = arith.divf %46, %47 : vector<8x32xf32>
    %49 = vector.extract_strided_slice %41 {offsets = [0, 32], sizes = [8, 32], strides = [1, 1]} : vector<8x96xf32> to vector<8x32xf32>
    %50 = arith.addf %38, %49 : vector<8x32xf32>
    %51 = arith.negf %50 : vector<8x32xf32>
    %52 = math.exp %51 : vector<8x32xf32>
    %cst_29 = arith.constant 1.000000e+00 : f32
    %53 = vector.broadcast %cst_29 : f32 to vector<8x32xf32>
    %54 = arith.addf %53, %52 : vector<8x32xf32>
    %55 = arith.divf %53, %54 : vector<8x32xf32>
    %56 = vector.extract_strided_slice %41 {offsets = [0, 64], sizes = [8, 32], strides = [1, 1]} : vector<8x96xf32> to vector<8x32xf32>
    %57 = arith.addf %56, %29 : vector<8x32xf32>
    %58 = arith.mulf %48, %57 : vector<8x32xf32>
    %59 = arith.addf %40, %58 : vector<8x32xf32>
    %60 = math.tanh %59 : vector<8x32xf32>
    %cst_30 = arith.constant 1.000000e+00 : f32
    %61 = vector.broadcast %cst_30 : f32 to vector<8x32xf32>
    %62 = arith.subf %61, %55 : vector<8x32xf32>
    %63 = arith.mulf %62, %60 : vector<8x32xf32>
    %64 = arith.mulf %55, %33 : vector<8x32xf32>
    %65 = arith.addf %63, %64 : vector<8x32xf32>
    %66 = vector.extract_strided_slice %22 {offsets = [7, 0, 0], sizes = [1, 8, 32], strides = [1, 1, 1]} : vector<8x8x32xf32> to vector<1x8x32xf32>
    %67 = vector.shape_cast %66 : vector<1x8x32xf32> to vector<8x32xf32>
    %68 = vector.extract_strided_slice %23 {offsets = [7, 0, 0], sizes = [1, 8, 32], strides = [1, 1, 1]} : vector<8x8x32xf32> to vector<1x8x32xf32>
    %69 = vector.shape_cast %68 : vector<1x8x32xf32> to vector<8x32xf32>
    %70 = vector.extract_strided_slice %24 {offsets = [7, 0, 0], sizes = [1, 8, 32], strides = [1, 1, 1]} : vector<8x8x32xf32> to vector<1x8x32xf32>
    %71 = vector.shape_cast %70 : vector<1x8x32xf32> to vector<8x32xf32>
    %cst_31 = arith.constant dense<0.000000e+00> : vector<8x96xf32>
    %72 = tpu.matmul %34, %26, %cst_31 {dimension_numbers = #tpu.dot_dimension_numbers<[1], [0], [0], [1], [0, 0, 1, 1], [], []>} : vector<8x32xf32>, vector<32x96xf32>, vector<8x96xf32> -> vector<8x96xf32>
    %73 = vector.extract_strided_slice %72 {offsets = [0, 0], sizes = [8, 32], strides = [1, 1]} : vector<8x96xf32> to vector<8x32xf32>
    %74 = arith.addf %67, %73 : vector<8x32xf32>
    %75 = arith.negf %74 : vector<8x32xf32>
    %76 = math.exp %75 : vector<8x32xf32>
    %cst_32 = arith.constant 1.000000e+00 : f32
    %77 = vector.broadcast %cst_32 : f32 to vector<8x32xf32>
    %78 = arith.addf %77, %76 : vector<8x32xf32>
    %79 = arith.divf %77, %78 : vector<8x32xf32>
    %80 = vector.extract_strided_slice %72 {offsets = [0, 32], sizes = [8, 32], strides = [1, 1]} : vector<8x96xf32> to vector<8x32xf32>
    %81 = arith.addf %69, %80 : vector<8x32xf32>
    %82 = arith.negf %81 : vector<8x32xf32>
    %83 = math.exp %82 : vector<8x32xf32>
    %cst_33 = arith.constant 1.000000e+00 : f32
    %84 = vector.broadcast %cst_33 : f32 to vector<8x32xf32>
    %85 = arith.addf %84, %83 : vector<8x32xf32>
    %86 = arith.divf %84, %85 : vector<8x32xf32>
    %87 = vector.extract_strided_slice %72 {offsets = [0, 64], sizes = [8, 32], strides = [1, 1]} : vector<8x96xf32> to vector<8x32xf32>
    %88 = arith.addf %87, %32 : vector<8x32xf32>
    %89 = arith.mulf %79, %88 : vector<8x32xf32>
    %90 = arith.addf %71, %89 : vector<8x32xf32>
    %91 = math.tanh %90 : vector<8x32xf32>
    %cst_34 = arith.constant 1.000000e+00 : f32
    %92 = vector.broadcast %cst_34 : f32 to vector<8x32xf32>
    %93 = arith.subf %92, %86 : vector<8x32xf32>
    %94 = arith.mulf %93, %91 : vector<8x32xf32>
    %95 = arith.mulf %86, %34 : vector<8x32xf32>
    %96 = arith.addf %94, %95 : vector<8x32xf32>
    %97 = vector.extract_strided_slice %11 {offsets = [1, 0, 0], sizes = [1, 8, 32], strides = [1, 1, 1]} : vector<8x8x32xf32> to vector<1x8x32xf32>
    %98 = vector.shape_cast %97 : vector<1x8x32xf32> to vector<8x32xf32>
    %99 = vector.extract_strided_slice %12 {offsets = [1, 0, 0], sizes = [1, 8, 32], strides = [1, 1, 1]} : vector<8x8x32xf32> to vector<1x8x32xf32>
    %100 = vector.shape_cast %99 : vector<1x8x32xf32> to vector<8x32xf32>
    %101 = vector.extract_strided_slice %13 {offsets = [1, 0, 0], sizes = [1, 8, 32], strides = [1, 1, 1]} : vector<8x8x32xf32> to vector<1x8x32xf32>
    %102 = vector.shape_cast %101 : vector<1x8x32xf32> to vector<8x32xf32>
    %cst_35 = arith.constant dense<0.000000e+00> : vector<8x96xf32>
    %103 = tpu.matmul %65, %25, %cst_35 {dimension_numbers = #tpu.dot_dimension_numbers<[1], [0], [0], [1], [0, 0, 1, 1], [], []>} : vector<8x32xf32>, vector<32x96xf32>, vector<8x96xf32> -> vector<8x96xf32>
    %104 = vector.extract_strided_slice %103 {offsets = [0, 0], sizes = [8, 32], strides = [1, 1]} : vector<8x96xf32> to vector<8x32xf32>
    %105 = arith.addf %98, %104 : vector<8x32xf32>
    %106 = arith.negf %105 : vector<8x32xf32>
    %107 = math.exp %106 : vector<8x32xf32>
    %cst_36 = arith.constant 1.000000e+00 : f32
    %108 = vector.broadcast %cst_36 : f32 to vector<8x32xf32>
    %109 = arith.addf %108, %107 : vector<8x32xf32>
    %110 = arith.divf %108, %109 : vector<8x32xf32>
    %111 = vector.extract_strided_slice %103 {offsets = [0, 32], sizes = [8, 32], strides = [1, 1]} : vector<8x96xf32> to vector<8x32xf32>
    %112 = arith.addf %100, %111 : vector<8x32xf32>
    %113 = arith.negf %112 : vector<8x32xf32>
    %114 = math.exp %113 : vector<8x32xf32>
    %cst_37 = arith.constant 1.000000e+00 : f32
    %115 = vector.broadcast %cst_37 : f32 to vector<8x32xf32>
    %116 = arith.addf %115, %114 : vector<8x32xf32>
    %117 = arith.divf %115, %116 : vector<8x32xf32>
    %118 = vector.extract_strided_slice %103 {offsets = [0, 64], sizes = [8, 32], strides = [1, 1]} : vector<8x96xf32> to vector<8x32xf32>
    %119 = arith.addf %118, %29 : vector<8x32xf32>
    %120 = arith.mulf %110, %119 : vector<8x32xf32>
    %121 = arith.addf %102, %120 : vector<8x32xf32>
    %122 = math.tanh %121 : vector<8x32xf32>
    %cst_38 = arith.constant 1.000000e+00 : f32
    %123 = vector.broadcast %cst_38 : f32 to vector<8x32xf32>
    %124 = arith.subf %123, %117 : vector<8x32xf32>
    %125 = arith.mulf %124, %122 : vector<8x32xf32>
    %126 = arith.mulf %117, %65 : vector<8x32xf32>
    %127 = arith.addf %125, %126 : vector<8x32xf32>
    %128 = vector.extract_strided_slice %22 {offsets = [6, 0, 0], sizes = [1, 8, 32], strides = [1, 1, 1]} : vector<8x8x32xf32> to vector<1x8x32xf32>
    %129 = vector.shape_cast %128 : vector<1x8x32xf32> to vector<8x32xf32>
    %130 = vector.extract_strided_slice %23 {offsets = [6, 0, 0], sizes = [1, 8, 32], strides = [1, 1, 1]} : vector<8x8x32xf32> to vector<1x8x32xf32>
    %131 = vector.shape_cast %130 : vector<1x8x32xf32> to vector<8x32xf32>
    %132 = vector.extract_strided_slice %24 {offsets = [6, 0, 0], sizes = [1, 8, 32], strides = [1, 1, 1]} : vector<8x8x32xf32> to vector<1x8x32xf32>
    %133 = vector.shape_cast %132 : vector<1x8x32xf32> to vector<8x32xf32>
    %cst_39 = arith.constant dense<0.000000e+00> : vector<8x96xf32>
    %134 = tpu.matmul %96, %26, %cst_39 {dimension_numbers = #tpu.dot_dimension_numbers<[1], [0], [0], [1], [0, 0, 1, 1], [], []>} : vector<8x32xf32>, vector<32x96xf32>, vector<8x96xf32> -> vector<8x96xf32>
    %135 = vector.extract_strided_slice %134 {offsets = [0, 0], sizes = [8, 32], strides = [1, 1]} : vector<8x96xf32> to vector<8x32xf32>
    %136 = arith.addf %129, %135 : vector<8x32xf32>
    %137 = arith.negf %136 : vector<8x32xf32>
    %138 = math.exp %137 : vector<8x32xf32>
    %cst_40 = arith.constant 1.000000e+00 : f32
    %139 = vector.broadcast %cst_40 : f32 to vector<8x32xf32>
    %140 = arith.addf %139, %138 : vector<8x32xf32>
    %141 = arith.divf %139, %140 : vector<8x32xf32>
    %142 = vector.extract_strided_slice %134 {offsets = [0, 32], sizes = [8, 32], strides = [1, 1]} : vector<8x96xf32> to vector<8x32xf32>
    %143 = arith.addf %131, %142 : vector<8x32xf32>
    %144 = arith.negf %143 : vector<8x32xf32>
    %145 = math.exp %144 : vector<8x32xf32>
    %cst_41 = arith.constant 1.000000e+00 : f32
    %146 = vector.broadcast %cst_41 : f32 to vector<8x32xf32>
    %147 = arith.addf %146, %145 : vector<8x32xf32>
    %148 = arith.divf %146, %147 : vector<8x32xf32>
    %149 = vector.extract_strided_slice %134 {offsets = [0, 64], sizes = [8, 32], strides = [1, 1]} : vector<8x96xf32> to vector<8x32xf32>
    %150 = arith.addf %149, %32 : vector<8x32xf32>
    %151 = arith.mulf %141, %150 : vector<8x32xf32>
    %152 = arith.addf %133, %151 : vector<8x32xf32>
    %153 = math.tanh %152 : vector<8x32xf32>
    %cst_42 = arith.constant 1.000000e+00 : f32
    %154 = vector.broadcast %cst_42 : f32 to vector<8x32xf32>
    %155 = arith.subf %154, %148 : vector<8x32xf32>
    %156 = arith.mulf %155, %153 : vector<8x32xf32>
    %157 = arith.mulf %148, %96 : vector<8x32xf32>
    %158 = arith.addf %156, %157 : vector<8x32xf32>
    %159 = vector.extract_strided_slice %11 {offsets = [2, 0, 0], sizes = [1, 8, 32], strides = [1, 1, 1]} : vector<8x8x32xf32> to vector<1x8x32xf32>
    %160 = vector.shape_cast %159 : vector<1x8x32xf32> to vector<8x32xf32>
    %161 = vector.extract_strided_slice %12 {offsets = [2, 0, 0], sizes = [1, 8, 32], strides = [1, 1, 1]} : vector<8x8x32xf32> to vector<1x8x32xf32>
    %162 = vector.shape_cast %161 : vector<1x8x32xf32> to vector<8x32xf32>
    %163 = vector.extract_strided_slice %13 {offsets = [2, 0, 0], sizes = [1, 8, 32], strides = [1, 1, 1]} : vector<8x8x32xf32> to vector<1x8x32xf32>
    %164 = vector.shape_cast %163 : vector<1x8x32xf32> to vector<8x32xf32>
    %cst_43 = arith.constant dense<0.000000e+00> : vector<8x96xf32>
    %165 = tpu.matmul %127, %25, %cst_43 {dimension_numbers = #tpu.dot_dimension_numbers<[1], [0], [0], [1], [0, 0, 1, 1], [], []>} : vector<8x32xf32>, vector<32x96xf32>, vector<8x96xf32> -> vector<8x96xf32>
    %166 = vector.extract_strided_slice %165 {offsets = [0, 0], sizes = [8, 32], strides = [1, 1]} : vector<8x96xf32> to vector<8x32xf32>
    %167 = arith.addf %160, %166 : vector<8x32xf32>
    %168 = arith.negf %167 : vector<8x32xf32>
    %169 = math.exp %168 : vector<8x32xf32>
    %cst_44 = arith.constant 1.000000e+00 : f32
    %170 = vector.broadcast %cst_44 : f32 to vector<8x32xf32>
    %171 = arith.addf %170, %169 : vector<8x32xf32>
    %172 = arith.divf %170, %171 : vector<8x32xf32>
    %173 = vector.extract_strided_slice %165 {offsets = [0, 32], sizes = [8, 32], strides = [1, 1]} : vector<8x96xf32> to vector<8x32xf32>
    %174 = arith.addf %162, %173 : vector<8x32xf32>
    %175 = arith.negf %174 : vector<8x32xf32>
    %176 = math.exp %175 : vector<8x32xf32>
    %cst_45 = arith.constant 1.000000e+00 : f32
    %177 = vector.broadcast %cst_45 : f32 to vector<8x32xf32>
    %178 = arith.addf %177, %176 : vector<8x32xf32>
    %179 = arith.divf %177, %178 : vector<8x32xf32>
    %180 = vector.extract_strided_slice %165 {offsets = [0, 64], sizes = [8, 32], strides = [1, 1]} : vector<8x96xf32> to vector<8x32xf32>
    %181 = arith.addf %180, %29 : vector<8x32xf32>
    %182 = arith.mulf %172, %181 : vector<8x32xf32>
    %183 = arith.addf %164, %182 : vector<8x32xf32>
    %184 = math.tanh %183 : vector<8x32xf32>
    %cst_46 = arith.constant 1.000000e+00 : f32
    %185 = vector.broadcast %cst_46 : f32 to vector<8x32xf32>
    %186 = arith.subf %185, %179 : vector<8x32xf32>
    %187 = arith.mulf %186, %184 : vector<8x32xf32>
    %188 = arith.mulf %179, %127 : vector<8x32xf32>
    %189 = arith.addf %187, %188 : vector<8x32xf32>
    %190 = vector.extract_strided_slice %22 {offsets = [5, 0, 0], sizes = [1, 8, 32], strides = [1, 1, 1]} : vector<8x8x32xf32> to vector<1x8x32xf32>
    %191 = vector.shape_cast %190 : vector<1x8x32xf32> to vector<8x32xf32>
    %192 = vector.extract_strided_slice %23 {offsets = [5, 0, 0], sizes = [1, 8, 32], strides = [1, 1, 1]} : vector<8x8x32xf32> to vector<1x8x32xf32>
    %193 = vector.shape_cast %192 : vector<1x8x32xf32> to vector<8x32xf32>
    %194 = vector.extract_strided_slice %24 {offsets = [5, 0, 0], sizes = [1, 8, 32], strides = [1, 1, 1]} : vector<8x8x32xf32> to vector<1x8x32xf32>
    %195 = vector.shape_cast %194 : vector<1x8x32xf32> to vector<8x32xf32>
    %cst_47 = arith.constant dense<0.000000e+00> : vector<8x96xf32>
    %196 = tpu.matmul %158, %26, %cst_47 {dimension_numbers = #tpu.dot_dimension_numbers<[1], [0], [0], [1], [0, 0, 1, 1], [], []>} : vector<8x32xf32>, vector<32x96xf32>, vector<8x96xf32> -> vector<8x96xf32>
    %197 = vector.extract_strided_slice %196 {offsets = [0, 0], sizes = [8, 32], strides = [1, 1]} : vector<8x96xf32> to vector<8x32xf32>
    %198 = arith.addf %191, %197 : vector<8x32xf32>
    %199 = arith.negf %198 : vector<8x32xf32>
    %200 = math.exp %199 : vector<8x32xf32>
    %cst_48 = arith.constant 1.000000e+00 : f32
    %201 = vector.broadcast %cst_48 : f32 to vector<8x32xf32>
    %202 = arith.addf %201, %200 : vector<8x32xf32>
    %203 = arith.divf %201, %202 : vector<8x32xf32>
    %204 = vector.extract_strided_slice %196 {offsets = [0, 32], sizes = [8, 32], strides = [1, 1]} : vector<8x96xf32> to vector<8x32xf32>
    %205 = arith.addf %193, %204 : vector<8x32xf32>
    %206 = arith.negf %205 : vector<8x32xf32>
    %207 = math.exp %206 : vector<8x32xf32>
    %cst_49 = arith.constant 1.000000e+00 : f32
    %208 = vector.broadcast %cst_49 : f32 to vector<8x32xf32>
    %209 = arith.addf %208, %207 : vector<8x32xf32>
    %210 = arith.divf %208, %209 : vector<8x32xf32>
    %211 = vector.extract_strided_slice %196 {offsets = [0, 64], sizes = [8, 32], strides = [1, 1]} : vector<8x96xf32> to vector<8x32xf32>
    %212 = arith.addf %211, %32 : vector<8x32xf32>
    %213 = arith.mulf %203, %212 : vector<8x32xf32>
    %214 = arith.addf %195, %213 : vector<8x32xf32>
    %215 = math.tanh %214 : vector<8x32xf32>
    %cst_50 = arith.constant 1.000000e+00 : f32
    %216 = vector.broadcast %cst_50 : f32 to vector<8x32xf32>
    %217 = arith.subf %216, %210 : vector<8x32xf32>
    %218 = arith.mulf %217, %215 : vector<8x32xf32>
    %219 = arith.mulf %210, %158 : vector<8x32xf32>
    %220 = arith.addf %218, %219 : vector<8x32xf32>
    %221 = vector.extract_strided_slice %11 {offsets = [3, 0, 0], sizes = [1, 8, 32], strides = [1, 1, 1]} : vector<8x8x32xf32> to vector<1x8x32xf32>
    %222 = vector.shape_cast %221 : vector<1x8x32xf32> to vector<8x32xf32>
    %223 = vector.extract_strided_slice %12 {offsets = [3, 0, 0], sizes = [1, 8, 32], strides = [1, 1, 1]} : vector<8x8x32xf32> to vector<1x8x32xf32>
    %224 = vector.shape_cast %223 : vector<1x8x32xf32> to vector<8x32xf32>
    %225 = vector.extract_strided_slice %13 {offsets = [3, 0, 0], sizes = [1, 8, 32], strides = [1, 1, 1]} : vector<8x8x32xf32> to vector<1x8x32xf32>
    %226 = vector.shape_cast %225 : vector<1x8x32xf32> to vector<8x32xf32>
    %cst_51 = arith.constant dense<0.000000e+00> : vector<8x96xf32>
    %227 = tpu.matmul %189, %25, %cst_51 {dimension_numbers = #tpu.dot_dimension_numbers<[1], [0], [0], [1], [0, 0, 1, 1], [], []>} : vector<8x32xf32>, vector<32x96xf32>, vector<8x96xf32> -> vector<8x96xf32>
    %228 = vector.extract_strided_slice %227 {offsets = [0, 0], sizes = [8, 32], strides = [1, 1]} : vector<8x96xf32> to vector<8x32xf32>
    %229 = arith.addf %222, %228 : vector<8x32xf32>
    %230 = arith.negf %229 : vector<8x32xf32>
    %231 = math.exp %230 : vector<8x32xf32>
    %cst_52 = arith.constant 1.000000e+00 : f32
    %232 = vector.broadcast %cst_52 : f32 to vector<8x32xf32>
    %233 = arith.addf %232, %231 : vector<8x32xf32>
    %234 = arith.divf %232, %233 : vector<8x32xf32>
    %235 = vector.extract_strided_slice %227 {offsets = [0, 32], sizes = [8, 32], strides = [1, 1]} : vector<8x96xf32> to vector<8x32xf32>
    %236 = arith.addf %224, %235 : vector<8x32xf32>
    %237 = arith.negf %236 : vector<8x32xf32>
    %238 = math.exp %237 : vector<8x32xf32>
    %cst_53 = arith.constant 1.000000e+00 : f32
    %239 = vector.broadcast %cst_53 : f32 to vector<8x32xf32>
    %240 = arith.addf %239, %238 : vector<8x32xf32>
    %241 = arith.divf %239, %240 : vector<8x32xf32>
    %242 = vector.extract_strided_slice %227 {offsets = [0, 64], sizes = [8, 32], strides = [1, 1]} : vector<8x96xf32> to vector<8x32xf32>
    %243 = arith.addf %242, %29 : vector<8x32xf32>
    %244 = arith.mulf %234, %243 : vector<8x32xf32>
    %245 = arith.addf %226, %244 : vector<8x32xf32>
    %246 = math.tanh %245 : vector<8x32xf32>
    %cst_54 = arith.constant 1.000000e+00 : f32
    %247 = vector.broadcast %cst_54 : f32 to vector<8x32xf32>
    %248 = arith.subf %247, %241 : vector<8x32xf32>
    %249 = arith.mulf %248, %246 : vector<8x32xf32>
    %250 = arith.mulf %241, %189 : vector<8x32xf32>
    %251 = arith.addf %249, %250 : vector<8x32xf32>
    %252 = vector.extract_strided_slice %22 {offsets = [4, 0, 0], sizes = [1, 8, 32], strides = [1, 1, 1]} : vector<8x8x32xf32> to vector<1x8x32xf32>
    %253 = vector.shape_cast %252 : vector<1x8x32xf32> to vector<8x32xf32>
    %254 = vector.extract_strided_slice %23 {offsets = [4, 0, 0], sizes = [1, 8, 32], strides = [1, 1, 1]} : vector<8x8x32xf32> to vector<1x8x32xf32>
    %255 = vector.shape_cast %254 : vector<1x8x32xf32> to vector<8x32xf32>
    %256 = vector.extract_strided_slice %24 {offsets = [4, 0, 0], sizes = [1, 8, 32], strides = [1, 1, 1]} : vector<8x8x32xf32> to vector<1x8x32xf32>
    %257 = vector.shape_cast %256 : vector<1x8x32xf32> to vector<8x32xf32>
    %cst_55 = arith.constant dense<0.000000e+00> : vector<8x96xf32>
    %258 = tpu.matmul %220, %26, %cst_55 {dimension_numbers = #tpu.dot_dimension_numbers<[1], [0], [0], [1], [0, 0, 1, 1], [], []>} : vector<8x32xf32>, vector<32x96xf32>, vector<8x96xf32> -> vector<8x96xf32>
    %259 = vector.extract_strided_slice %258 {offsets = [0, 0], sizes = [8, 32], strides = [1, 1]} : vector<8x96xf32> to vector<8x32xf32>
    %260 = arith.addf %253, %259 : vector<8x32xf32>
    %261 = arith.negf %260 : vector<8x32xf32>
    %262 = math.exp %261 : vector<8x32xf32>
    %cst_56 = arith.constant 1.000000e+00 : f32
    %263 = vector.broadcast %cst_56 : f32 to vector<8x32xf32>
    %264 = arith.addf %263, %262 : vector<8x32xf32>
    %265 = arith.divf %263, %264 : vector<8x32xf32>
    %266 = vector.extract_strided_slice %258 {offsets = [0, 32], sizes = [8, 32], strides = [1, 1]} : vector<8x96xf32> to vector<8x32xf32>
    %267 = arith.addf %255, %266 : vector<8x32xf32>
    %268 = arith.negf %267 : vector<8x32xf32>
    %269 = math.exp %268 : vector<8x32xf32>
    %cst_57 = arith.constant 1.000000e+00 : f32
    %270 = vector.broadcast %cst_57 : f32 to vector<8x32xf32>
    %271 = arith.addf %270, %269 : vector<8x32xf32>
    %272 = arith.divf %270, %271 : vector<8x32xf32>
    %273 = vector.extract_strided_slice %258 {offsets = [0, 64], sizes = [8, 32], strides = [1, 1]} : vector<8x96xf32> to vector<8x32xf32>
    %274 = arith.addf %273, %32 : vector<8x32xf32>
    %275 = arith.mulf %265, %274 : vector<8x32xf32>
    %276 = arith.addf %257, %275 : vector<8x32xf32>
    %277 = math.tanh %276 : vector<8x32xf32>
    %cst_58 = arith.constant 1.000000e+00 : f32
    %278 = vector.broadcast %cst_58 : f32 to vector<8x32xf32>
    %279 = arith.subf %278, %272 : vector<8x32xf32>
    %280 = arith.mulf %279, %277 : vector<8x32xf32>
    %281 = arith.mulf %272, %220 : vector<8x32xf32>
    %282 = arith.addf %280, %281 : vector<8x32xf32>
    %283 = vector.extract_strided_slice %11 {offsets = [4, 0, 0], sizes = [1, 8, 32], strides = [1, 1, 1]} : vector<8x8x32xf32> to vector<1x8x32xf32>
    %284 = vector.shape_cast %283 : vector<1x8x32xf32> to vector<8x32xf32>
    %285 = vector.extract_strided_slice %12 {offsets = [4, 0, 0], sizes = [1, 8, 32], strides = [1, 1, 1]} : vector<8x8x32xf32> to vector<1x8x32xf32>
    %286 = vector.shape_cast %285 : vector<1x8x32xf32> to vector<8x32xf32>
    %287 = vector.extract_strided_slice %13 {offsets = [4, 0, 0], sizes = [1, 8, 32], strides = [1, 1, 1]} : vector<8x8x32xf32> to vector<1x8x32xf32>
    %288 = vector.shape_cast %287 : vector<1x8x32xf32> to vector<8x32xf32>
    %cst_59 = arith.constant dense<0.000000e+00> : vector<8x96xf32>
    %289 = tpu.matmul %251, %25, %cst_59 {dimension_numbers = #tpu.dot_dimension_numbers<[1], [0], [0], [1], [0, 0, 1, 1], [], []>} : vector<8x32xf32>, vector<32x96xf32>, vector<8x96xf32> -> vector<8x96xf32>
    %290 = vector.extract_strided_slice %289 {offsets = [0, 0], sizes = [8, 32], strides = [1, 1]} : vector<8x96xf32> to vector<8x32xf32>
    %291 = arith.addf %284, %290 : vector<8x32xf32>
    %292 = arith.negf %291 : vector<8x32xf32>
    %293 = math.exp %292 : vector<8x32xf32>
    %cst_60 = arith.constant 1.000000e+00 : f32
    %294 = vector.broadcast %cst_60 : f32 to vector<8x32xf32>
    %295 = arith.addf %294, %293 : vector<8x32xf32>
    %296 = arith.divf %294, %295 : vector<8x32xf32>
    %297 = vector.extract_strided_slice %289 {offsets = [0, 32], sizes = [8, 32], strides = [1, 1]} : vector<8x96xf32> to vector<8x32xf32>
    %298 = arith.addf %286, %297 : vector<8x32xf32>
    %299 = arith.negf %298 : vector<8x32xf32>
    %300 = math.exp %299 : vector<8x32xf32>
    %cst_61 = arith.constant 1.000000e+00 : f32
    %301 = vector.broadcast %cst_61 : f32 to vector<8x32xf32>
    %302 = arith.addf %301, %300 : vector<8x32xf32>
    %303 = arith.divf %301, %302 : vector<8x32xf32>
    %304 = vector.extract_strided_slice %289 {offsets = [0, 64], sizes = [8, 32], strides = [1, 1]} : vector<8x96xf32> to vector<8x32xf32>
    %305 = arith.addf %304, %29 : vector<8x32xf32>
    %306 = arith.mulf %296, %305 : vector<8x32xf32>
    %307 = arith.addf %288, %306 : vector<8x32xf32>
    %308 = math.tanh %307 : vector<8x32xf32>
    %cst_62 = arith.constant 1.000000e+00 : f32
    %309 = vector.broadcast %cst_62 : f32 to vector<8x32xf32>
    %310 = arith.subf %309, %303 : vector<8x32xf32>
    %311 = arith.mulf %310, %308 : vector<8x32xf32>
    %312 = arith.mulf %303, %251 : vector<8x32xf32>
    %313 = arith.addf %311, %312 : vector<8x32xf32>
    %314 = vector.extract_strided_slice %22 {offsets = [3, 0, 0], sizes = [1, 8, 32], strides = [1, 1, 1]} : vector<8x8x32xf32> to vector<1x8x32xf32>
    %315 = vector.shape_cast %314 : vector<1x8x32xf32> to vector<8x32xf32>
    %316 = vector.extract_strided_slice %23 {offsets = [3, 0, 0], sizes = [1, 8, 32], strides = [1, 1, 1]} : vector<8x8x32xf32> to vector<1x8x32xf32>
    %317 = vector.shape_cast %316 : vector<1x8x32xf32> to vector<8x32xf32>
    %318 = vector.extract_strided_slice %24 {offsets = [3, 0, 0], sizes = [1, 8, 32], strides = [1, 1, 1]} : vector<8x8x32xf32> to vector<1x8x32xf32>
    %319 = vector.shape_cast %318 : vector<1x8x32xf32> to vector<8x32xf32>
    %cst_63 = arith.constant dense<0.000000e+00> : vector<8x96xf32>
    %320 = tpu.matmul %282, %26, %cst_63 {dimension_numbers = #tpu.dot_dimension_numbers<[1], [0], [0], [1], [0, 0, 1, 1], [], []>} : vector<8x32xf32>, vector<32x96xf32>, vector<8x96xf32> -> vector<8x96xf32>
    %321 = vector.extract_strided_slice %320 {offsets = [0, 0], sizes = [8, 32], strides = [1, 1]} : vector<8x96xf32> to vector<8x32xf32>
    %322 = arith.addf %315, %321 : vector<8x32xf32>
    %323 = arith.negf %322 : vector<8x32xf32>
    %324 = math.exp %323 : vector<8x32xf32>
    %cst_64 = arith.constant 1.000000e+00 : f32
    %325 = vector.broadcast %cst_64 : f32 to vector<8x32xf32>
    %326 = arith.addf %325, %324 : vector<8x32xf32>
    %327 = arith.divf %325, %326 : vector<8x32xf32>
    %328 = vector.extract_strided_slice %320 {offsets = [0, 32], sizes = [8, 32], strides = [1, 1]} : vector<8x96xf32> to vector<8x32xf32>
    %329 = arith.addf %317, %328 : vector<8x32xf32>
    %330 = arith.negf %329 : vector<8x32xf32>
    %331 = math.exp %330 : vector<8x32xf32>
    %cst_65 = arith.constant 1.000000e+00 : f32
    %332 = vector.broadcast %cst_65 : f32 to vector<8x32xf32>
    %333 = arith.addf %332, %331 : vector<8x32xf32>
    %334 = arith.divf %332, %333 : vector<8x32xf32>
    %335 = vector.extract_strided_slice %320 {offsets = [0, 64], sizes = [8, 32], strides = [1, 1]} : vector<8x96xf32> to vector<8x32xf32>
    %336 = arith.addf %335, %32 : vector<8x32xf32>
    %337 = arith.mulf %327, %336 : vector<8x32xf32>
    %338 = arith.addf %319, %337 : vector<8x32xf32>
    %339 = math.tanh %338 : vector<8x32xf32>
    %cst_66 = arith.constant 1.000000e+00 : f32
    %340 = vector.broadcast %cst_66 : f32 to vector<8x32xf32>
    %341 = arith.subf %340, %334 : vector<8x32xf32>
    %342 = arith.mulf %341, %339 : vector<8x32xf32>
    %343 = arith.mulf %334, %282 : vector<8x32xf32>
    %344 = arith.addf %342, %343 : vector<8x32xf32>
    %345 = vector.extract_strided_slice %11 {offsets = [5, 0, 0], sizes = [1, 8, 32], strides = [1, 1, 1]} : vector<8x8x32xf32> to vector<1x8x32xf32>
    %346 = vector.shape_cast %345 : vector<1x8x32xf32> to vector<8x32xf32>
    %347 = vector.extract_strided_slice %12 {offsets = [5, 0, 0], sizes = [1, 8, 32], strides = [1, 1, 1]} : vector<8x8x32xf32> to vector<1x8x32xf32>
    %348 = vector.shape_cast %347 : vector<1x8x32xf32> to vector<8x32xf32>
    %349 = vector.extract_strided_slice %13 {offsets = [5, 0, 0], sizes = [1, 8, 32], strides = [1, 1, 1]} : vector<8x8x32xf32> to vector<1x8x32xf32>
    %350 = vector.shape_cast %349 : vector<1x8x32xf32> to vector<8x32xf32>
    %cst_67 = arith.constant dense<0.000000e+00> : vector<8x96xf32>
    %351 = tpu.matmul %313, %25, %cst_67 {dimension_numbers = #tpu.dot_dimension_numbers<[1], [0], [0], [1], [0, 0, 1, 1], [], []>} : vector<8x32xf32>, vector<32x96xf32>, vector<8x96xf32> -> vector<8x96xf32>
    %352 = vector.extract_strided_slice %351 {offsets = [0, 0], sizes = [8, 32], strides = [1, 1]} : vector<8x96xf32> to vector<8x32xf32>
    %353 = arith.addf %346, %352 : vector<8x32xf32>
    %354 = arith.negf %353 : vector<8x32xf32>
    %355 = math.exp %354 : vector<8x32xf32>
    %cst_68 = arith.constant 1.000000e+00 : f32
    %356 = vector.broadcast %cst_68 : f32 to vector<8x32xf32>
    %357 = arith.addf %356, %355 : vector<8x32xf32>
    %358 = arith.divf %356, %357 : vector<8x32xf32>
    %359 = vector.extract_strided_slice %351 {offsets = [0, 32], sizes = [8, 32], strides = [1, 1]} : vector<8x96xf32> to vector<8x32xf32>
    %360 = arith.addf %348, %359 : vector<8x32xf32>
    %361 = arith.negf %360 : vector<8x32xf32>
    %362 = math.exp %361 : vector<8x32xf32>
    %cst_69 = arith.constant 1.000000e+00 : f32
    %363 = vector.broadcast %cst_69 : f32 to vector<8x32xf32>
    %364 = arith.addf %363, %362 : vector<8x32xf32>
    %365 = arith.divf %363, %364 : vector<8x32xf32>
    %366 = vector.extract_strided_slice %351 {offsets = [0, 64], sizes = [8, 32], strides = [1, 1]} : vector<8x96xf32> to vector<8x32xf32>
    %367 = arith.addf %366, %29 : vector<8x32xf32>
    %368 = arith.mulf %358, %367 : vector<8x32xf32>
    %369 = arith.addf %350, %368 : vector<8x32xf32>
    %370 = math.tanh %369 : vector<8x32xf32>
    %cst_70 = arith.constant 1.000000e+00 : f32
    %371 = vector.broadcast %cst_70 : f32 to vector<8x32xf32>
    %372 = arith.subf %371, %365 : vector<8x32xf32>
    %373 = arith.mulf %372, %370 : vector<8x32xf32>
    %374 = arith.mulf %365, %313 : vector<8x32xf32>
    %375 = arith.addf %373, %374 : vector<8x32xf32>
    %376 = vector.extract_strided_slice %22 {offsets = [2, 0, 0], sizes = [1, 8, 32], strides = [1, 1, 1]} : vector<8x8x32xf32> to vector<1x8x32xf32>
    %377 = vector.shape_cast %376 : vector<1x8x32xf32> to vector<8x32xf32>
    %378 = vector.extract_strided_slice %23 {offsets = [2, 0, 0], sizes = [1, 8, 32], strides = [1, 1, 1]} : vector<8x8x32xf32> to vector<1x8x32xf32>
    %379 = vector.shape_cast %378 : vector<1x8x32xf32> to vector<8x32xf32>
    %380 = vector.extract_strided_slice %24 {offsets = [2, 0, 0], sizes = [1, 8, 32], strides = [1, 1, 1]} : vector<8x8x32xf32> to vector<1x8x32xf32>
    %381 = vector.shape_cast %380 : vector<1x8x32xf32> to vector<8x32xf32>
    %cst_71 = arith.constant dense<0.000000e+00> : vector<8x96xf32>
    %382 = tpu.matmul %344, %26, %cst_71 {dimension_numbers = #tpu.dot_dimension_numbers<[1], [0], [0], [1], [0, 0, 1, 1], [], []>} : vector<8x32xf32>, vector<32x96xf32>, vector<8x96xf32> -> vector<8x96xf32>
    %383 = vector.extract_strided_slice %382 {offsets = [0, 0], sizes = [8, 32], strides = [1, 1]} : vector<8x96xf32> to vector<8x32xf32>
    %384 = arith.addf %377, %383 : vector<8x32xf32>
    %385 = arith.negf %384 : vector<8x32xf32>
    %386 = math.exp %385 : vector<8x32xf32>
    %cst_72 = arith.constant 1.000000e+00 : f32
    %387 = vector.broadcast %cst_72 : f32 to vector<8x32xf32>
    %388 = arith.addf %387, %386 : vector<8x32xf32>
    %389 = arith.divf %387, %388 : vector<8x32xf32>
    %390 = vector.extract_strided_slice %382 {offsets = [0, 32], sizes = [8, 32], strides = [1, 1]} : vector<8x96xf32> to vector<8x32xf32>
    %391 = arith.addf %379, %390 : vector<8x32xf32>
    %392 = arith.negf %391 : vector<8x32xf32>
    %393 = math.exp %392 : vector<8x32xf32>
    %cst_73 = arith.constant 1.000000e+00 : f32
    %394 = vector.broadcast %cst_73 : f32 to vector<8x32xf32>
    %395 = arith.addf %394, %393 : vector<8x32xf32>
    %396 = arith.divf %394, %395 : vector<8x32xf32>
    %397 = vector.extract_strided_slice %382 {offsets = [0, 64], sizes = [8, 32], strides = [1, 1]} : vector<8x96xf32> to vector<8x32xf32>
    %398 = arith.addf %397, %32 : vector<8x32xf32>
    %399 = arith.mulf %389, %398 : vector<8x32xf32>
    %400 = arith.addf %381, %399 : vector<8x32xf32>
    %401 = math.tanh %400 : vector<8x32xf32>
    %cst_74 = arith.constant 1.000000e+00 : f32
    %402 = vector.broadcast %cst_74 : f32 to vector<8x32xf32>
    %403 = arith.subf %402, %396 : vector<8x32xf32>
    %404 = arith.mulf %403, %401 : vector<8x32xf32>
    %405 = arith.mulf %396, %344 : vector<8x32xf32>
    %406 = arith.addf %404, %405 : vector<8x32xf32>
    %407 = vector.extract_strided_slice %11 {offsets = [6, 0, 0], sizes = [1, 8, 32], strides = [1, 1, 1]} : vector<8x8x32xf32> to vector<1x8x32xf32>
    %408 = vector.shape_cast %407 : vector<1x8x32xf32> to vector<8x32xf32>
    %409 = vector.extract_strided_slice %12 {offsets = [6, 0, 0], sizes = [1, 8, 32], strides = [1, 1, 1]} : vector<8x8x32xf32> to vector<1x8x32xf32>
    %410 = vector.shape_cast %409 : vector<1x8x32xf32> to vector<8x32xf32>
    %411 = vector.extract_strided_slice %13 {offsets = [6, 0, 0], sizes = [1, 8, 32], strides = [1, 1, 1]} : vector<8x8x32xf32> to vector<1x8x32xf32>
    %412 = vector.shape_cast %411 : vector<1x8x32xf32> to vector<8x32xf32>
    %cst_75 = arith.constant dense<0.000000e+00> : vector<8x96xf32>
    %413 = tpu.matmul %375, %25, %cst_75 {dimension_numbers = #tpu.dot_dimension_numbers<[1], [0], [0], [1], [0, 0, 1, 1], [], []>} : vector<8x32xf32>, vector<32x96xf32>, vector<8x96xf32> -> vector<8x96xf32>
    %414 = vector.extract_strided_slice %413 {offsets = [0, 0], sizes = [8, 32], strides = [1, 1]} : vector<8x96xf32> to vector<8x32xf32>
    %415 = arith.addf %408, %414 : vector<8x32xf32>
    %416 = arith.negf %415 : vector<8x32xf32>
    %417 = math.exp %416 : vector<8x32xf32>
    %cst_76 = arith.constant 1.000000e+00 : f32
    %418 = vector.broadcast %cst_76 : f32 to vector<8x32xf32>
    %419 = arith.addf %418, %417 : vector<8x32xf32>
    %420 = arith.divf %418, %419 : vector<8x32xf32>
    %421 = vector.extract_strided_slice %413 {offsets = [0, 32], sizes = [8, 32], strides = [1, 1]} : vector<8x96xf32> to vector<8x32xf32>
    %422 = arith.addf %410, %421 : vector<8x32xf32>
    %423 = arith.negf %422 : vector<8x32xf32>
    %424 = math.exp %423 : vector<8x32xf32>
    %cst_77 = arith.constant 1.000000e+00 : f32
    %425 = vector.broadcast %cst_77 : f32 to vector<8x32xf32>
    %426 = arith.addf %425, %424 : vector<8x32xf32>
    %427 = arith.divf %425, %426 : vector<8x32xf32>
    %428 = vector.extract_strided_slice %413 {offsets = [0, 64], sizes = [8, 32], strides = [1, 1]} : vector<8x96xf32> to vector<8x32xf32>
    %429 = arith.addf %428, %29 : vector<8x32xf32>
    %430 = arith.mulf %420, %429 : vector<8x32xf32>
    %431 = arith.addf %412, %430 : vector<8x32xf32>
    %432 = math.tanh %431 : vector<8x32xf32>
    %cst_78 = arith.constant 1.000000e+00 : f32
    %433 = vector.broadcast %cst_78 : f32 to vector<8x32xf32>
    %434 = arith.subf %433, %427 : vector<8x32xf32>
    %435 = arith.mulf %434, %432 : vector<8x32xf32>
    %436 = arith.mulf %427, %375 : vector<8x32xf32>
    %437 = arith.addf %435, %436 : vector<8x32xf32>
    %438 = vector.extract_strided_slice %22 {offsets = [1, 0, 0], sizes = [1, 8, 32], strides = [1, 1, 1]} : vector<8x8x32xf32> to vector<1x8x32xf32>
    %439 = vector.shape_cast %438 : vector<1x8x32xf32> to vector<8x32xf32>
    %440 = vector.extract_strided_slice %23 {offsets = [1, 0, 0], sizes = [1, 8, 32], strides = [1, 1, 1]} : vector<8x8x32xf32> to vector<1x8x32xf32>
    %441 = vector.shape_cast %440 : vector<1x8x32xf32> to vector<8x32xf32>
    %442 = vector.extract_strided_slice %24 {offsets = [1, 0, 0], sizes = [1, 8, 32], strides = [1, 1, 1]} : vector<8x8x32xf32> to vector<1x8x32xf32>
    %443 = vector.shape_cast %442 : vector<1x8x32xf32> to vector<8x32xf32>
    %cst_79 = arith.constant dense<0.000000e+00> : vector<8x96xf32>
    %444 = tpu.matmul %406, %26, %cst_79 {dimension_numbers = #tpu.dot_dimension_numbers<[1], [0], [0], [1], [0, 0, 1, 1], [], []>} : vector<8x32xf32>, vector<32x96xf32>, vector<8x96xf32> -> vector<8x96xf32>
    %445 = vector.extract_strided_slice %444 {offsets = [0, 0], sizes = [8, 32], strides = [1, 1]} : vector<8x96xf32> to vector<8x32xf32>
    %446 = arith.addf %439, %445 : vector<8x32xf32>
    %447 = arith.negf %446 : vector<8x32xf32>
    %448 = math.exp %447 : vector<8x32xf32>
    %cst_80 = arith.constant 1.000000e+00 : f32
    %449 = vector.broadcast %cst_80 : f32 to vector<8x32xf32>
    %450 = arith.addf %449, %448 : vector<8x32xf32>
    %451 = arith.divf %449, %450 : vector<8x32xf32>
    %452 = vector.extract_strided_slice %444 {offsets = [0, 32], sizes = [8, 32], strides = [1, 1]} : vector<8x96xf32> to vector<8x32xf32>
    %453 = arith.addf %441, %452 : vector<8x32xf32>
    %454 = arith.negf %453 : vector<8x32xf32>
    %455 = math.exp %454 : vector<8x32xf32>
    %cst_81 = arith.constant 1.000000e+00 : f32
    %456 = vector.broadcast %cst_81 : f32 to vector<8x32xf32>
    %457 = arith.addf %456, %455 : vector<8x32xf32>
    %458 = arith.divf %456, %457 : vector<8x32xf32>
    %459 = vector.extract_strided_slice %444 {offsets = [0, 64], sizes = [8, 32], strides = [1, 1]} : vector<8x96xf32> to vector<8x32xf32>
    %460 = arith.addf %459, %32 : vector<8x32xf32>
    %461 = arith.mulf %451, %460 : vector<8x32xf32>
    %462 = arith.addf %443, %461 : vector<8x32xf32>
    %463 = math.tanh %462 : vector<8x32xf32>
    %cst_82 = arith.constant 1.000000e+00 : f32
    %464 = vector.broadcast %cst_82 : f32 to vector<8x32xf32>
    %465 = arith.subf %464, %458 : vector<8x32xf32>
    %466 = arith.mulf %465, %463 : vector<8x32xf32>
    %467 = arith.mulf %458, %406 : vector<8x32xf32>
    %468 = arith.addf %466, %467 : vector<8x32xf32>
    %469 = vector.extract_strided_slice %11 {offsets = [7, 0, 0], sizes = [1, 8, 32], strides = [1, 1, 1]} : vector<8x8x32xf32> to vector<1x8x32xf32>
    %470 = vector.shape_cast %469 : vector<1x8x32xf32> to vector<8x32xf32>
    %471 = vector.extract_strided_slice %12 {offsets = [7, 0, 0], sizes = [1, 8, 32], strides = [1, 1, 1]} : vector<8x8x32xf32> to vector<1x8x32xf32>
    %472 = vector.shape_cast %471 : vector<1x8x32xf32> to vector<8x32xf32>
    %473 = vector.extract_strided_slice %13 {offsets = [7, 0, 0], sizes = [1, 8, 32], strides = [1, 1, 1]} : vector<8x8x32xf32> to vector<1x8x32xf32>
    %474 = vector.shape_cast %473 : vector<1x8x32xf32> to vector<8x32xf32>
    %cst_83 = arith.constant dense<0.000000e+00> : vector<8x96xf32>
    %475 = tpu.matmul %437, %25, %cst_83 {dimension_numbers = #tpu.dot_dimension_numbers<[1], [0], [0], [1], [0, 0, 1, 1], [], []>} : vector<8x32xf32>, vector<32x96xf32>, vector<8x96xf32> -> vector<8x96xf32>
    %476 = vector.extract_strided_slice %475 {offsets = [0, 0], sizes = [8, 32], strides = [1, 1]} : vector<8x96xf32> to vector<8x32xf32>
    %477 = arith.addf %470, %476 : vector<8x32xf32>
    %478 = arith.negf %477 : vector<8x32xf32>
    %479 = math.exp %478 : vector<8x32xf32>
    %cst_84 = arith.constant 1.000000e+00 : f32
    %480 = vector.broadcast %cst_84 : f32 to vector<8x32xf32>
    %481 = arith.addf %480, %479 : vector<8x32xf32>
    %482 = arith.divf %480, %481 : vector<8x32xf32>
    %483 = vector.extract_strided_slice %475 {offsets = [0, 32], sizes = [8, 32], strides = [1, 1]} : vector<8x96xf32> to vector<8x32xf32>
    %484 = arith.addf %472, %483 : vector<8x32xf32>
    %485 = arith.negf %484 : vector<8x32xf32>
    %486 = math.exp %485 : vector<8x32xf32>
    %cst_85 = arith.constant 1.000000e+00 : f32
    %487 = vector.broadcast %cst_85 : f32 to vector<8x32xf32>
    %488 = arith.addf %487, %486 : vector<8x32xf32>
    %489 = arith.divf %487, %488 : vector<8x32xf32>
    %490 = vector.extract_strided_slice %475 {offsets = [0, 64], sizes = [8, 32], strides = [1, 1]} : vector<8x96xf32> to vector<8x32xf32>
    %491 = arith.addf %490, %29 : vector<8x32xf32>
    %492 = arith.mulf %482, %491 : vector<8x32xf32>
    %493 = arith.addf %474, %492 : vector<8x32xf32>
    %494 = math.tanh %493 : vector<8x32xf32>
    %cst_86 = arith.constant 1.000000e+00 : f32
    %495 = vector.broadcast %cst_86 : f32 to vector<8x32xf32>
    %496 = arith.subf %495, %489 : vector<8x32xf32>
    %497 = arith.mulf %496, %494 : vector<8x32xf32>
    %498 = arith.mulf %489, %437 : vector<8x32xf32>
    %499 = arith.addf %497, %498 : vector<8x32xf32>
    %500 = vector.extract_strided_slice %22 {offsets = [0, 0, 0], sizes = [1, 8, 32], strides = [1, 1, 1]} : vector<8x8x32xf32> to vector<1x8x32xf32>
    %501 = vector.shape_cast %500 : vector<1x8x32xf32> to vector<8x32xf32>
    %502 = vector.extract_strided_slice %23 {offsets = [0, 0, 0], sizes = [1, 8, 32], strides = [1, 1, 1]} : vector<8x8x32xf32> to vector<1x8x32xf32>
    %503 = vector.shape_cast %502 : vector<1x8x32xf32> to vector<8x32xf32>
    %504 = vector.extract_strided_slice %24 {offsets = [0, 0, 0], sizes = [1, 8, 32], strides = [1, 1, 1]} : vector<8x8x32xf32> to vector<1x8x32xf32>
    %505 = vector.shape_cast %504 : vector<1x8x32xf32> to vector<8x32xf32>
    %cst_87 = arith.constant dense<0.000000e+00> : vector<8x96xf32>
    %506 = tpu.matmul %468, %26, %cst_87 {dimension_numbers = #tpu.dot_dimension_numbers<[1], [0], [0], [1], [0, 0, 1, 1], [], []>} : vector<8x32xf32>, vector<32x96xf32>, vector<8x96xf32> -> vector<8x96xf32>
    %507 = vector.extract_strided_slice %506 {offsets = [0, 0], sizes = [8, 32], strides = [1, 1]} : vector<8x96xf32> to vector<8x32xf32>
    %508 = arith.addf %501, %507 : vector<8x32xf32>
    %509 = arith.negf %508 : vector<8x32xf32>
    %510 = math.exp %509 : vector<8x32xf32>
    %cst_88 = arith.constant 1.000000e+00 : f32
    %511 = vector.broadcast %cst_88 : f32 to vector<8x32xf32>
    %512 = arith.addf %511, %510 : vector<8x32xf32>
    %513 = arith.divf %511, %512 : vector<8x32xf32>
    %514 = vector.extract_strided_slice %506 {offsets = [0, 32], sizes = [8, 32], strides = [1, 1]} : vector<8x96xf32> to vector<8x32xf32>
    %515 = arith.addf %503, %514 : vector<8x32xf32>
    %516 = arith.negf %515 : vector<8x32xf32>
    %517 = math.exp %516 : vector<8x32xf32>
    %cst_89 = arith.constant 1.000000e+00 : f32
    %518 = vector.broadcast %cst_89 : f32 to vector<8x32xf32>
    %519 = arith.addf %518, %517 : vector<8x32xf32>
    %520 = arith.divf %518, %519 : vector<8x32xf32>
    %521 = vector.extract_strided_slice %506 {offsets = [0, 64], sizes = [8, 32], strides = [1, 1]} : vector<8x96xf32> to vector<8x32xf32>
    %522 = arith.addf %521, %32 : vector<8x32xf32>
    %523 = arith.mulf %513, %522 : vector<8x32xf32>
    %524 = arith.addf %505, %523 : vector<8x32xf32>
    %525 = math.tanh %524 : vector<8x32xf32>
    %cst_90 = arith.constant 1.000000e+00 : f32
    %526 = vector.broadcast %cst_90 : f32 to vector<8x32xf32>
    %527 = arith.subf %526, %520 : vector<8x32xf32>
    %528 = arith.mulf %527, %525 : vector<8x32xf32>
    %529 = arith.mulf %520, %468 : vector<8x32xf32>
    %530 = arith.addf %528, %529 : vector<8x32xf32>
    %c0_91 = arith.constant 0 : index
    %c0_92 = arith.constant 0 : index
    %531 = vector.load %arg13[%c0_91, %c0_92] : memref<8x32xf32, #tpu.memory_space<vmem>>, vector<8x32xf32>
    tpu.vector_store %arg13[%c0_91, %c0_92], %499 {strides = array<i32>} : memref<8x32xf32, #tpu.memory_space<vmem>>, vector<8x32xf32>,
    %c0_93 = arith.constant 0 : index
    %c0_94 = arith.constant 0 : index
    %532 = vector.load %arg14[%c0_93, %c0_94] : memref<8x32xf32, #tpu.memory_space<vmem>>, vector<8x32xf32>
    tpu.vector_store %arg14[%c0_93, %c0_94], %530 {strides = array<i32>} : memref<8x32xf32, #tpu.memory_space<vmem>>, vector<8x32xf32>,
    %c0_i32_95 = arith.constant 0 : i32
    %533 = arith.cmpi eq, %arg1, %c0_i32_95 : i32
    %534 = arith.extui %533 : i1 to i32
    %c0_i32_96 = arith.constant 0 : i32
    %535 = arith.cmpi ne, %534, %c0_i32_96 : i32
    scf.if %535 {
      %536 = tpu.concatenate %499, %530 in 1 : vector<8x32xf32>, vector<8x32xf32> -> vector<8x64xf32>
      %c0_97 = arith.constant 0 : index
      %c0_98 = arith.constant 0 : index
      %537 = vector.load %arg12[%c0_97, %c0_98] : memref<8x64xf32, #tpu.memory_space<vmem>>, vector<8x64xf32>
      tpu.vector_store %arg12[%c0_97, %c0_98], %536 {strides = array<i32>} : memref<8x64xf32, #tpu.memory_space<vmem>>, vector<8x64xf32>,
    } else {
    }
    return
  }
  func.func @transform_0(%arg0: i32, %arg1: i32) -> (i32, i32, i32) {
    %c0_i32 = arith.constant 0 : i32
    %c0_i32_0 = arith.constant 0 : i32
    return %arg1, %arg0, %c0_i32 : i32, i32, i32
  }
  func.func @transform_1(%arg0: i32, %arg1: i32) -> (i32, i32, i32) {
    %c0_i32 = arith.constant 0 : i32
    %0 = arith.subi %c0_i32, %arg1 : i32
    %c0_i32_0 = arith.constant 0 : i32
    %c0_i32_1 = arith.constant 0 : i32
    return %0, %arg0, %c0_i32_0 : i32, i32, i32
  }
  func.func @transform_2(%arg0: i32, %arg1: i32) -> (i32, i32) {
    %c0_i32 = arith.constant 0 : i32
    %c0_i32_0 = arith.constant 0 : i32
    %c0_i32_1 = arith.constant 0 : i32
    return %c0_i32, %c0_i32_0 : i32, i32
  }
  func.func @transform_3(%arg0: i32, %arg1: i32) -> (i32, i32) {
    %c0_i32 = arith.constant 0 : i32
    %c0_i32_0 = arith.constant 0 : i32
    %c0_i32_1 = arith.constant 0 : i32
    return %c0_i32, %c0_i32_0 : i32, i32
  }
  func.func @transform_4(%arg0: i32, %arg1: i32) -> (i32, i32) {
    %c0_i32 = arith.constant 0 : i32
    %c0_i32_0 = arith.constant 0 : i32
    %c0_i32_1 = arith.constant 0 : i32
    return %c0_i32, %c0_i32_0 : i32, i32
  }
  func.func @transform_5(%arg0: i32, %arg1: i32) -> (i32, i32) {
    %c0_i32 = arith.constant 0 : i32
    %c0_i32_0 = arith.constant 0 : i32
    %c0_i32_1 = arith.constant 0 : i32
    return %c0_i32, %c0_i32_0 : i32, i32
  }
  func.func @transform_6(%arg0: i32, %arg1: i32) -> (i32, i32) {
    %c0_i32 = arith.constant 0 : i32
    %c0_i32_0 = arith.constant 0 : i32
    %c0_i32_1 = arith.constant 0 : i32
    return %c0_i32, %c0_i32_0 : i32, i32
  }
  func.func @transform_7(%arg0: i32, %arg1: i32) -> (i32, i32) {
    %c0_i32 = arith.constant 0 : i32
    %c0_i32_0 = arith.constant 0 : i32
    %c0_i32_1 = arith.constant 0 : i32
    return %c0_i32, %c0_i32_0 : i32, i32
  }
  func.func @transform_8(%arg0: i32, %arg1: i32) -> (i32, i32) {
    %c0_i32 = arith.constant 0 : i32
    %c0_i32_0 = arith.constant 0 : i32
    %c0_i32_1 = arith.constant 0 : i32
    return %c0_i32, %c0_i32_0 : i32, i32
  }
  func.func @transform_9(%arg0: i32, %arg1: i32) -> (i32, i32) {
    %c0_i32 = arith.constant 0 : i32
    %c0_i32_0 = arith.constant 0 : i32
    %c0_i32_1 = arith.constant 0 : i32
    return %c0_i32, %c0_i32_0 : i32, i32
  }
  func.func @transform_10(%arg0: i32, %arg1: i32) -> (i32, i32) {
    %c0_i32 = arith.constant 0 : i32
    %c0_i32_0 = arith.constant 0 : i32
    return %arg0, %c0_i32 : i32, i32
  }
}

</mosaic_0001>

<llo_original>
// kernel: tpu_custom_call.1
$region0: #{tpu_custom_call.1}
  #allocation0 [shape = 'u32[]', space=smem, size = 0x4, offset = 0x4, fixed_abs, tag = 'smem constant byte address 0x4 - core index']
  #allocation1 [shape = 'u32[72,128]{1,0:T(1,128)}', space=vmem, size = 0x9000, scoped, tag = 'internal scratch']
  #allocation2 [shape = 'f32[8,32]{1,0:T(8,128)}', space=vmem, size = 0x1000, scoped, tag = 'scratch operand']
  #allocation3 [shape = 'f32[8,32]{1,0:T(8,128)}', space=vmem, size = 0x1000, scoped, tag = 'scratch operand']
  %s0 = inlined_call_operand.hbm [shape: f32[8,8,16], index: 0, kind: input, shape index: {}]
  %s1 = inlined_call_operand.hbm [shape: f32[8,8,16], index: 1, kind: input, shape index: {}]
  %s2 = inlined_call_operand.hbm [shape: f32[16,96], index: 2, kind: input, shape index: {}]
  %s3 = inlined_call_operand.hbm [shape: f32[16,96], index: 3, kind: input, shape index: {}]
  %s4 = inlined_call_operand.vmem [shape: f32[1,96], index: 4, kind: input, shape index: {}]
  %s5 = inlined_call_operand.vmem [shape: f32[1,96], index: 5, kind: input, shape index: {}]
  %s6 = inlined_call_operand.hbm [shape: f32[32,96], index: 6, kind: input, shape index: {}]
  %s7 = inlined_call_operand.hbm [shape: f32[32,96], index: 7, kind: input, shape index: {}]
  %s8 = inlined_call_operand.vmem [shape: f32[1,32], index: 8, kind: input, shape index: {}]
  %s9 = inlined_call_operand.vmem [shape: f32[1,32], index: 9, kind: input, shape index: {}]
  %s10 = inlined_call_operand.hbm [shape: f32[8,64], index: 10, kind: output, shape index: {}]
  %s11 = sld [smem:[#allocation0]]
  $region82: #{tpu_custom_call.1} parent=0
    _
  %s13 = ssub.s32 1, %s11
  %s14 = scalar_select 0, %s13, %s11
  $region1: #{tpu_custom_call.1} parent=0
    #allocation4 [shape = 'u8[32768]{0}', space=vmem, size = 0x8000, scoped, tag = 'input window, operand 0, single buffered']
    #allocation5 [shape = 's32[1]{0}', space=sflag, size = 0x4, scoped, tag = 'scoped memory for tpu_custom_call.1']
    #allocation6 [shape = 's32[1]{0}', space=sflag, size = 0x4, scoped, tag = 'scoped memory for tpu_custom_call.1']
    #allocation7 [shape = 'u8[32768]{0}', space=vmem, size = 0x8000, scoped, tag = 'input window, operand 1, single buffered']
    #allocation8 [shape = 's32[1]{0}', space=sflag, size = 0x4, scoped, tag = 'scoped memory for tpu_custom_call.1']
    #allocation9 [shape = 'u8[8192]{0}', space=vmem, size = 0x2000, scoped, tag = 'input window, operand 2, single buffered']
    #allocation10 [shape = 'u8[8192]{0}', space=vmem, size = 0x2000, scoped, tag = 'input window, operand 3, single buffered']
    #allocation11 [shape = 's32[1]{0}', space=sflag, size = 0x4, scoped, tag = 'scoped memory for tpu_custom_call.1']
    #allocation12 [shape = 'u8[16384]{0}', space=vmem, size = 0x4000, scoped, tag = 'input window, operand 6, single buffered']
    #allocation13 [shape = 'u8[16384]{0}', space=vmem, size = 0x4000, scoped, tag = 'input window, operand 7, single buffered']
    #allocation14 [shape = 's32[1]{0}', space=sflag, size = 0x4, scoped, tag = 'scoped memory for tpu_custom_call.1']
    #allocation15 [shape = 'u8[4096]{0}', space=vmem, size = 0x1000, scoped, tag = 'output window, operand 0, single buffered']
    %15 = vsyncpa [#allocation5], 0
    %16 = vsyncpa [#allocation8], 0
    %17 = vsyncpa [#allocation11], 0
    %18 = vsyncpa [#allocation14], 0
    %19 = vsyncpa [#allocation6], 0
    // Predicated region
    $region2: #{tpu_custom_call.1} parent=1 // pred_check
      _
    $region3: #{tpu_custom_call.1} parent=1 // pred_check_branch
      %21 = sbr.rel (0) target = $region5
    $region4: #{tpu_custom_call.1} parent=1 // pred_region
      %23 = vsyncadd [#allocation5], 0
      %s24 = sshll.u32 %s0, 4
      %s25 = int_to_ptr.hbm [resolvable:$true] %s24
      %s26 = sshll.u32 [#allocation4], 4
      %s27 = int_to_ptr.vmem [resolvable:$true] %s26
      %32 = dma.hbm_to_vmem [thread:$0]  %s25, 1024, %s27, [#allocation5], 128, 128, 8
    $region5: #{tpu_custom_call.1} parent=1 // pred_fallthru
      _
    // Predicated region
    $region6: #{tpu_custom_call.1} parent=1 // pred_check
      _
    $region7: #{tpu_custom_call.1} parent=1 // pred_check_branch
      %34 = sbr.rel (0) target = $region9
    $region8: #{tpu_custom_call.1} parent=1 // pred_region
      %s35 = ssub.s32 0, 0
      %s36 = smul.u32 8, %s35
      %38 = vsyncadd [#allocation8], 0
      %s39 = smul.addr %s36, 8
      %s40 = scalar_lea.hbm %s1, %s39
      %s41 = sshll.u32 %s40, 4
      %s42 = int_to_ptr.hbm [resolvable:$true] %s41
      %s43 = sshll.u32 [#allocation7], 4
      %s44 = int_to_ptr.vmem [resolvable:$true] %s43
      %49 = dma.hbm_to_vmem [thread:$0]  %s42, 1024, %s44, [#allocation8], 128, 128, 8
    $region9: #{tpu_custom_call.1} parent=1 // pred_fallthru
      _
    // Predicated region
    $region10: #{tpu_custom_call.1} parent=1 // pred_check
      _
    $region11: #{tpu_custom_call.1} parent=1 // pred_check_branch
      %51 = sbr.rel (0) target = $region13
    $region12: #{tpu_custom_call.1} parent=1 // pred_region
      %53 = vsyncadd [#allocation8], 0
      %s54 = sshll.u32 %s2, 4
      %s55 = int_to_ptr.hbm [resolvable:$true] %s54
      %s56 = sshll.u32 [#allocation9], 4
      %s57 = int_to_ptr.vmem [resolvable:$true] %s56
      %62 = dma.hbm_to_vmem [thread:$0]  %s55, 256, %s57, [#allocation8], 128, 128, 8
    $region13: #{tpu_custom_call.1} parent=1 // pred_fallthru
      _
    // Predicated region
    $region14: #{tpu_custom_call.1} parent=1 // pred_check
      _
    $region15: #{tpu_custom_call.1} parent=1 // pred_check_branch
      %64 = sbr.rel (0) target = $region17
    $region16: #{tpu_custom_call.1} parent=1 // pred_region
      %66 = vsyncadd [#allocation11], 0
      %s67 = sshll.u32 %s3, 4
      %s68 = int_to_ptr.hbm [resolvable:$true] %s67
      %s69 = sshll.u32 [#allocation10], 4
      %s70 = int_to_ptr.vmem [resolvable:$true] %s69
      %75 = dma.hbm_to_vmem [thread:$0]  %s68, 256, %s70, [#allocation11], 128, 128, 8
    $region17: #{tpu_custom_call.1} parent=1 // pred_fallthru
      _
    // Predicated region
    $region18: #{tpu_custom_call.1} parent=1 // pred_check
      _
    $region19: #{tpu_custom_call.1} parent=1 // pred_check_branch
      %77 = sbr.rel (0) target = $region21
    $region20: #{tpu_custom_call.1} parent=1 // pred_region
      _
    $region21: #{tpu_custom_call.1} parent=1 // pred_fallthru
      _
    // Predicated region
    $region22: #{tpu_custom_call.1} parent=1 // pred_check
      _
    $region23: #{tpu_custom_call.1} parent=1 // pred_check_branch
      %79 = sbr.rel (0) target = $region25
    $region24: #{tpu_custom_call.1} parent=1 // pred_region
      _
    $region25: #{tpu_custom_call.1} parent=1 // pred_fallthru
      _
    // Predicated region
    $region26: #{tpu_custom_call.1} parent=1 // pred_check
      _
    $region27: #{tpu_custom_call.1} parent=1 // pred_check_branch
      %81 = sbr.rel (0) target = $region29
    $region28: #{tpu_custom_call.1} parent=1 // pred_region
      %83 = vsyncadd [#allocation11], 0
      %s84 = sshll.u32 %s6, 4
      %s85 = int_to_ptr.hbm [resolvable:$true] %s84
      %s86 = sshll.u32 [#allocation12], 4
      %s87 = int_to_ptr.vmem [resolvable:$true] %s86
      %92 = dma.hbm_to_vmem [thread:$0]  %s85, 512, %s87, [#allocation11], 128, 128, 8
    $region29: #{tpu_custom_call.1} parent=1 // pred_fallthru
      _
    // Predicated region
    $region30: #{tpu_custom_call.1} parent=1 // pred_check
      _
    $region31: #{tpu_custom_call.1} parent=1 // pred_check_branch
      %94 = sbr.rel (0) target = $region33
    $region32: #{tpu_custom_call.1} parent=1 // pred_region
      %96 = vsyncadd [#allocation14], 0
      %s97 = sshll.u32 %s7, 4
      %s98 = int_to_ptr.hbm [resolvable:$true] %s97
      %s99 = sshll.u32 [#allocation13], 4
      %s100 = int_to_ptr.vmem [resolvable:$true] %s99
      %105 = dma.hbm_to_vmem [thread:$0]  %s98, 512, %s100, [#allocation14], 128, 128, 8
    $region33: #{tpu_custom_call.1} parent=1 // pred_fallthru
      _
    // Predicated region
    $region34: #{tpu_custom_call.1} parent=1 // pred_check
      _
    $region35: #{tpu_custom_call.1} parent=1 // pred_check_branch
      %107 = sbr.rel (0) target = $region37
    $region36: #{tpu_custom_call.1} parent=1 // pred_region
      _
    $region37: #{tpu_custom_call.1} parent=1 // pred_fallthru
      _
    // Predicated region
    $region38: #{tpu_custom_call.1} parent=1 // pred_check
      _
    $region39: #{tpu_custom_call.1} parent=1 // pred_check_branch
      %109 = sbr.rel (0) target = $region41
    $region40: #{tpu_custom_call.1} parent=1 // pred_region
      _
    $region41: #{tpu_custom_call.1} parent=1 // pred_fallthru
      _
    // Predicated region
    $region42: #{tpu_custom_call.1} parent=1 // pred_check
      _
    $region43: #{tpu_custom_call.1} parent=1 // pred_check_branch
      %111 = sbr.rel (0) target = $region45
    $region44: #{tpu_custom_call.1} parent=1 // pred_region
      %113 = dma.done [#allocation5], 1024
    $region45: #{tpu_custom_call.1} parent=1 // pred_fallthru
      _
    // Predicated region
    $region46: #{tpu_custom_call.1} parent=1 // pred_check
      _
    $region47: #{tpu_custom_call.1} parent=1 // pred_check_branch
      %115 = sbr.rel (0) target = $region49
    $region48: #{tpu_custom_call.1} parent=1 // pred_region
      %117 = dma.done [#allocation8], 1024
    $region49: #{tpu_custom_call.1} parent=1 // pred_fallthru
      _
    // Predicated region
    $region50: #{tpu_custom_call.1} parent=1 // pred_check
      _
    $region51: #{tpu_custom_call.1} parent=1 // pred_check_branch
      %119 = sbr.rel (0) target = $region53
    $region52: #{tpu_custom_call.1} parent=1 // pred_region
      %121 = dma.done [#allocation8], 256
    $region53: #{tpu_custom_call.1} parent=1 // pred_fallthru
      _
    // Predicated region
    $region54: #{tpu_custom_call.1} parent=1 // pred_check
      _
    $region55: #{tpu_custom_call.1} parent=1 // pred_check_branch
      %123 = sbr.rel (0) target = $region57
    $region56: #{tpu_custom_call.1} parent=1 // pred_region
      %125 = dma.done [#allocation11], 256
    $region57: #{tpu_custom_call.1} parent=1 // pred_fallthru
      _
    // Predicated region
    $region58: #{tpu_custom_call.1} parent=1 // pred_check
      _
    $region59: #{tpu_custom_call.1} parent=1 // pred_check_branch
      %127 = sbr.rel (0) target = $region61
    $region60: #{tpu_custom_call.1} parent=1 // pred_region
      %129 = dma.done [#allocation11], 512
    $region61: #{tpu_custom_call.1} parent=1 // pred_fallthru
      _
    // Predicated region
    $region62: #{tpu_custom_call.1} parent=1 // pred_check
      _
    $region63: #{tpu_custom_call.1} parent=1 // pred_check_branch
      %131 = sbr.rel (0) target = $region65
    $region64: #{tpu_custom_call.1} parent=1 // pred_region
      %133 = dma.done [#allocation14], 512
    $region65: #{tpu_custom_call.1} parent=1 // pred_fallthru
      _
    %s134 = ssub.s32 0, 0
    %s135 = smul.u32 8, %s134
    %p136 = scmp.eq.s32.totalorder 0, 0
    // Predicated region
    $region66: #{tpu_custom_call.1} parent=1 // pred_check
      %p137 = pneg %p136
    $region67: #{tpu_custom_call.1} parent=1 // pred_check_branch
      %139 = sbr.rel (%p137) target = $region69
    $region68: #{tpu_custom_call.1} parent=1 // pred_region
      %vm140 = vcmask 261120
      %141 = vst.msk [vmem:[#allocation2] sm:$0xff] %vm140, 0.0
      %142 = vst.msk [vmem:[#allocation3] sm:$0xff] %vm140, 0.0
    $region69: #{tpu_custom_call.1} parent=1 // pred_fallthru
      _
    %v143 = vld [vmem:[#allocation4] sm:$0xff]
    %v144 = vld [vmem:[#allocation4 + $0x8] sm:$0xff]
    %v145 = vld [vmem:[#allocation4 + $0x10] sm:$0xff]
    %v146 = vld [vmem:[#allocation4 + $0x18] sm:$0xff]
    %v147 = vld [vmem:[#allocation4 + $0x20] sm:$0xff]
    %v148 = vld [vmem:[#allocation4 + $0x28] sm:$0xff]
    %v149 = vld [vmem:[#allocation4 + $0x30] sm:$0xff]
    %v150 = vld [vmem:[#allocation4 + $0x38] sm:$0xff]
    %v151 = vld [vmem:[#allocation9] sm:$0xff]
    %v152 = vld [vmem:[#allocation9 + $0x8] sm:$0xff]
    %v153 = vld [vmem:[%s4] sm:$0x1]
    %v155 = vperm.slane %v153, 0
    %vm157 = vcmask 130048
    %v159 = vsel %vm157, %v143, 0
    %v162 = vsel %vm157, %v144, 0
    %v165 = vsel %vm157, %v145, 0
    %v168 = vsel %vm157, %v146, 0
    %v171 = vsel %vm157, %v147, 0
    %v174 = vsel %vm157, %v148, 0
    %v177 = vsel %vm157, %v149, 0
    %v180 = vsel %vm157, %v150, 0
    %182 = vmatpush.msra.mxu0 0.0
    %183 = vmatpush.msra.mxu0 0.0
    %184 = vmatpush.msra.mxu0 0.0
    %185 = vmatpush.msra.mxu0 0.0
    %186 = vmatpush.msra.mxu0 0.0
    %187 = vmatpush.msra.mxu0 0.0
    %188 = vmatpush.msra.mxu0 0.0
    %189 = vmatpush.msra.mxu0 0.0
    %190 = vmatpush.msra.mxu0 0.0
    %191 = vmatpush.msra.mxu0 0.0
    %192 = vmatpush.msra.mxu0 0.0
    %193 = vmatpush.msra.mxu0 0.0
    %194 = vmatpush.msra.mxu0 0.0
    %195 = vmatpush.msra.mxu0 0.0
    %196 = vmatpush.msra.mxu0 %v152
    %197 = vmatpush.msra.mxu0 %v151
    %198 = vmatmul.f32.gmra.mxu0 %v159
    %v199 = vpop.f32.mrf.mxu0
    %v200 = vadd.f32 %v155, %v199
    %201 = vmatmul.f32.gmra.mxu0 %v162
    %v202 = vpop.f32.mrf.mxu0
    %v203 = vadd.f32 %v155, %v202
    %204 = vmatmul.f32.gmra.mxu0 %v165
    %v205 = vpop.f32.mrf.mxu0
    %v206 = vadd.f32 %v155, %v205
    %207 = vmatmul.f32.gmra.mxu0 %v168
    %v208 = vpop.f32.mrf.mxu0
    %v209 = vadd.f32 %v155, %v208
    %210 = vmatmul.f32.gmra.mxu0 %v171
    %v211 = vpop.f32.mrf.mxu0
    %v212 = vadd.f32 %v155, %v211
    %213 = vmatmul.f32.gmra.mxu0 %v174
    %v214 = vpop.f32.mrf.mxu0
    %v215 = vadd.f32 %v155, %v214
    %216 = vmatmul.f32.gmra.mxu0 %v177
    %v217 = vpop.f32.mrf.mxu0
    %v218 = vadd.f32 %v155, %v217
    %219 = vmatmul.f32.gmra.mxu0 %v180
    %v220 = vpop.f32.mrf.mxu0
    %v221 = vadd.f32 %v155, %v220
    %222 = vdwg.mxu0
    %v223 = vld [vmem:[#allocation7] sm:$0xff]
    %v224 = vld [vmem:[#allocation7 + $0x8] sm:$0xff]
    %v225 = vld [vmem:[#allocation7 + $0x10] sm:$0xff]
    %v226 = vld [vmem:[#allocation7 + $0x18] sm:$0xff]
    %v227 = vld [vmem:[#allocation7 + $0x20] sm:$0xff]
    %v228 = vld [vmem:[#allocation7 + $0x28] sm:$0xff]
    %v229 = vld [vmem:[#allocation7 + $0x30] sm:$0xff]
    %v230 = vld [vmem:[#allocation7 + $0x38] sm:$0xff]
    %v231 = vld [vmem:[#allocation10] sm:$0xff]
    %v232 = vld [vmem:[#allocation10 + $0x8] sm:$0xff]
    %v233 = vld [vmem:[%s5] sm:$0x1]
    %v235 = vperm.slane %v233, 0
    %v238 = vsel %vm157, %v223, 0
    %v241 = vsel %vm157, %v224, 0
    %v244 = vsel %vm157, %v225, 0
    %v247 = vsel %vm157, %v226, 0
    %v250 = vsel %vm157, %v227, 0
    %v253 = vsel %vm157, %v228, 0
    %v256 = vsel %vm157, %v229, 0
    %v259 = vsel %vm157, %v230, 0
    %261 = vmatpush.msra.mxu0 0.0
    %262 = vmatpush.msra.mxu0 0.0
    %263 = vmatpush.msra.mxu0 0.0
    %264 = vmatpush.msra.mxu0 0.0
    %265 = vmatpush.msra.mxu0 0.0
    %266 = vmatpush.msra.mxu0 0.0
    %267 = vmatpush.msra.mxu0 0.0
    %268 = vmatpush.msra.mxu0 0.0
    %269 = vmatpush.msra.mxu0 0.0
    %270 = vmatpush.msra.mxu0 0.0
    %271 = vmatpush.msra.mxu0 0.0
    %272 = vmatpush.msra.mxu0 0.0
    %273 = vmatpush.msra.mxu0 0.0
    %274 = vmatpush.msra.mxu0 0.0
    %275 = vmatpush.msra.mxu0 %v232
    %276 = vmatpush.msra.mxu0 %v231
    %277 = vmatmul.f32.gmra.mxu0 %v238
    %v278 = vpop.f32.mrf.mxu0
    %v279 = vadd.f32 %v235, %v278
    %280 = vmatmul.f32.gmra.mxu0 %v241
    %v281 = vpop.f32.mrf.mxu0
    %v282 = vadd.f32 %v235, %v281
    %283 = vmatmul.f32.gmra.mxu0 %v244
    %v284 = vpop.f32.mrf.mxu0
    %v285 = vadd.f32 %v235, %v284
    %286 = vmatmul.f32.gmra.mxu0 %v247
    %v287 = vpop.f32.mrf.mxu0
    %v288 = vadd.f32 %v235, %v287
    %289 = vmatmul.f32.gmra.mxu0 %v250
    %v290 = vpop.f32.mrf.mxu0
    %v291 = vadd.f32 %v235, %v290
    %292 = vmatmul.f32.gmra.mxu0 %v253
    %v293 = vpop.f32.mrf.mxu0
    %v294 = vadd.f32 %v235, %v293
    %295 = vmatmul.f32.gmra.mxu0 %v256
    %v296 = vpop.f32.mrf.mxu0
    %v297 = vadd.f32 %v235, %v296
    %298 = vmatmul.f32.gmra.mxu0 %v259
    %v299 = vpop.f32.mrf.mxu0
    %v300 = vadd.f32 %v235, %v299
    %301 = vdwg.mxu0
    %v302 = vld [vmem:[#allocation12] sm:$0xff]
    %v303 = vld [vmem:[#allocation12 + $0x8] sm:$0xff]
    %v304 = vld [vmem:[#allocation12 + $0x10] sm:$0xff]
    %v305 = vld [vmem:[#allocation12 + $0x18] sm:$0xff]
    %v306 = vld [vmem:[#allocation13] sm:$0xff]
    %v307 = vld [vmem:[#allocation13 + $0x8] sm:$0xff]
    %v308 = vld [vmem:[#allocation13 + $0x10] sm:$0xff]
    %v309 = vld [vmem:[#allocation13 + $0x18] sm:$0xff]
    %v310 = vld [vmem:[%s8] sm:$0x1]
    %v312 = vperm.slane %v310, 0
    %v313 = vld [vmem:[%s9] sm:$0x1]
    %v315 = vperm.slane %v313, 0
    %v316 = vld [vmem:[#allocation2] sm:$0xff]
    %v317 = vld [vmem:[#allocation3] sm:$0xff]
    %vm318 = vcmask 261120
    %v320 = vsel %vm318, %v316, 0
    %322 = vmatpush.msra.mxu0 0.0
    %323 = vmatpush.msra.mxu0 0.0
    %324 = vmatpush.msra.mxu0 0.0
    %325 = vmatpush.msra.mxu0 0.0
    %326 = vmatpush.msra.mxu0 0.0
    %327 = vmatpush.msra.mxu0 0.0
    %328 = vmatpush.msra.mxu0 0.0
    %329 = vmatpush.msra.mxu0 0.0
    %330 = vmatpush.msra.mxu0 0.0
    %331 = vmatpush.msra.mxu0 0.0
    %332 = vmatpush.msra.mxu0 0.0
    %333 = vmatpush.msra.mxu0 0.0
    %334 = vmatpush.msra.mxu0 %v305
    %335 = vmatpush.msra.mxu0 %v304
    %336 = vmatpush.msra.mxu0 %v303
    %337 = vmatpush.msra.mxu0 %v302
    %338 = vmatmul.f32.gmra.mxu0 %v320
    %v339 = vpop.f32.mrf.mxu0
    %v340 = vadd.f32 0.0, %v339
    %341 = vdwg.mxu0
    %v342 = vadd.f32 %v200, %v340
    %v343 = vxor.u32 %v342, 2147483648
    %v344 = vmul.f32 %v343, 1.442695
    %v345 = vpow.pop %v344
    %v346 = vadd.f32 %v345, 1.0
    %v347 = vrcp.pop %v346
    %v348 = vmul.f32 %v346, %v347
    %v349 = vsub.f32 1.0, %v348
    %v350 = vmul.f32 %v347, %v349
    %v351 = vadd.f32 %v347, %v350
    %vm352 = vweird.f32 %v346
    %vm353 = vweird.f32 %v347
    %vm354 = vmor %vm352, %vm353
    %v355 = vsel %vm354, %v347, %v351
    %v356 = vand.u32 2147483647, %v346
    %vm357 = vcmp.eq.f32.partialorder %v356, 8.507059e+37
    %v358 = vand.u32 %v346, 2147483648
    %v359 = vor.u32 1.1754944e-38, %v358
    %v360 = vsel %vm357, %v359, %v355
    %v361 = vmul.f32 1.0, %v360
    %362 = vrot.lane.b32.xlu0 %v312, 64
    %v363 = vpop.permute.xlu0 %362
    %v365 = vadd.f32 %v340, %v363
    %367 = vrot.lane.b32.xlu0 %v365, 64
    %v368 = vpop.permute.xlu0 %367
    %v370 = vmul.f32 %v361, %v368
    %372 = vrot.lane.b32.xlu0 %v370, 64
    %v373 = vpop.permute.xlu0 %372
    %v375 = vadd.f32 %v200, %v373
    %v376 = vtanh.pop %v375
    %v377 = vsub.f32 1.0, %v361
    %379 = vrot.lane.b32.xlu0 %v376, 96
    %v380 = vpop.permute.xlu0 %379
    %v382 = vmul.f32 %v377, %v380
    %383 = vrot.lane.b32.xlu0 %v316, 32
    %v384 = vpop.permute.xlu0 %383
    %v386 = vmul.f32 %v361, %v384
    %v387 = vadd.f32 %v382, %v386
    %v389 = vsel %vm318, %v317, 0
    %391 = vmatpush.msra.mxu0 0.0
    %392 = vmatpush.msra.mxu0 0.0
    %393 = vmatpush.msra.mxu0 0.0
    %394 = vmatpush.msra.mxu0 0.0
    %395 = vmatpush.msra.mxu0 0.0
    %396 = vmatpush.msra.mxu0 0.0
    %397 = vmatpush.msra.mxu0 0.0
    %398 = vmatpush.msra.mxu0 0.0
    %399 = vmatpush.msra.mxu0 0.0
    %400 = vmatpush.msra.mxu0 0.0
    %401 = vmatpush.msra.mxu0 0.0
    %402 = vmatpush.msra.mxu0 0.0
    %403 = vmatpush.msra.mxu0 %v309
    %404 = vmatpush.msra.mxu0 %v308
    %405 = vmatpush.msra.mxu0 %v307
    %406 = vmatpush.msra.mxu0 %v306
    %407 = vmatmul.f32.gmra.mxu0 %v389
    %v408 = vpop.f32.mrf.mxu0
    %v409 = vadd.f32 0.0, %v408
    %410 = vdwg.mxu0
    %v411 = vadd.f32 %v300, %v409
    %v412 = vxor.u32 %v411, 2147483648
    %v413 = vmul.f32 %v412, 1.442695
    %v414 = vpow.pop %v413
    %v415 = vadd.f32 %v414, 1.0
    %v416 = vrcp.pop %v415
    %v417 = vmul.f32 %v415, %v416
    %v418 = vsub.f32 1.0, %v417
    %v419 = vmul.f32 %v416, %v418
    %v420 = vadd.f32 %v416, %v419
    %vm421 = vweird.f32 %v415
    %vm422 = vweird.f32 %v416
    %vm423 = vmor %vm421, %vm422
    %v424 = vsel %vm423, %v416, %v420
    %v425 = vand.u32 2147483647, %v415
    %vm426 = vcmp.eq.f32.partialorder %v425, 8.507059e+37
    %v427 = vand.u32 %v415, 2147483648
    %v428 = vor.u32 1.1754944e-38, %v427
    %v429 = vsel %vm426, %v428, %v424
    %v430 = vmul.f32 1.0, %v429
    %431 = vrot.lane.b32.xlu0 %v315, 64
    %v432 = vpop.permute.xlu0 %431
    %v434 = vadd.f32 %v409, %v432
    %436 = vrot.lane.b32.xlu0 %v434, 64
    %v437 = vpop.permute.xlu0 %436
    %v439 = vmul.f32 %v430, %v437
    %441 = vrot.lane.b32.xlu0 %v439, 64
    %v442 = vpop.permute.xlu0 %441
    %v444 = vadd.f32 %v300, %v442
    %v445 = vtanh.pop %v444
    %v446 = vsub.f32 1.0, %v430
    %448 = vrot.lane.b32.xlu0 %v445, 96
    %v449 = vpop.permute.xlu0 %448
    %v451 = vmul.f32 %v446, %v449
    %452 = vrot.lane.b32.xlu0 %v317, 32
    %v453 = vpop.permute.xlu0 %452
    %v455 = vmul.f32 %v430, %v453
    %v456 = vadd.f32 %v451, %v455
    %458 = vrot.lane.b32.xlu0 %v387, 96
    %v459 = vpop.permute.xlu0 %458
    %v460 = vsel %vm318, %v459, 0
    %462 = vmatpush.msra.mxu0 0.0
    %463 = vmatpush.msra.mxu0 0.0
    %464 = vmatpush.msra.mxu0 0.0
    %465 = vmatpush.msra.mxu0 0.0
    %466 = vmatpush.msra.mxu0 0.0
    %467 = vmatpush.msra.mxu0 0.0
    %468 = vmatpush.msra.mxu0 0.0
    %469 = vmatpush.msra.mxu0 0.0
    %470 = vmatpush.msra.mxu0 0.0
    %471 = vmatpush.msra.mxu0 0.0
    %472 = vmatpush.msra.mxu0 0.0
    %473 = vmatpush.msra.mxu0 0.0
    %474 = vmatpush.msra.mxu0 %v305
    %475 = vmatpush.msra.mxu0 %v304
    %476 = vmatpush.msra.mxu0 %v303
    %477 = vmatpush.msra.mxu0 %v302
    %478 = vmatmul.f32.gmra.mxu0 %v460
    %v479 = vpop.f32.mrf.mxu0
    %v480 = vadd.f32 0.0, %v479
    %481 = vdwg.mxu0
    %v482 = vadd.f32 %v203, %v480
    %v483 = vxor.u32 %v482, 2147483648
    %v484 = vmul.f32 %v483, 1.442695
    %v485 = vpow.pop %v484
    %v486 = vadd.f32 %v485, 1.0
    %v487 = vrcp.pop %v486
    %v488 = vmul.f32 %v486, %v487
    %v489 = vsub.f32 1.0, %v488
    %v490 = vmul.f32 %v487, %v489
    %v491 = vadd.f32 %v487, %v490
    %vm492 = vweird.f32 %v486
    %vm493 = vweird.f32 %v487
    %vm494 = vmor %vm492, %vm493
    %v495 = vsel %vm494, %v487, %v491
    %v496 = vand.u32 2147483647, %v486
    %vm497 = vcmp.eq.f32.partialorder %v496, 8.507059e+37
    %v498 = vand.u32 %v486, 2147483648
    %v499 = vor.u32 1.1754944e-38, %v498
    %v500 = vsel %vm497, %v499, %v495
    %v501 = vmul.f32 1.0, %v500
    %v502 = vadd.f32 %v480, %v363
    %504 = vrot.lane.b32.xlu0 %v502, 64
    %v505 = vpop.permute.xlu0 %504
    %v507 = vmul.f32 %v501, %v505
    %509 = vrot.lane.b32.xlu0 %v507, 64
    %v510 = vpop.permute.xlu0 %509
    %v512 = vadd.f32 %v203, %v510
    %v513 = vtanh.pop %v512
    %v514 = vsub.f32 1.0, %v501
    %516 = vrot.lane.b32.xlu0 %v513, 96
    %v517 = vpop.permute.xlu0 %516
    %v519 = vmul.f32 %v514, %v517
    %v520 = vmul.f32 %v501, %v387
    %v521 = vadd.f32 %v519, %v520
    %523 = vrot.lane.b32.xlu0 %v456, 96
    %v524 = vpop.permute.xlu0 %523
    %v525 = vsel %vm318, %v524, 0
    %527 = vmatpush.msra.mxu0 0.0
    %528 = vmatpush.msra.mxu0 0.0
    %529 = vmatpush.msra.mxu0 0.0
    %530 = vmatpush.msra.mxu0 0.0
    %531 = vmatpush.msra.mxu0 0.0
    %532 = vmatpush.msra.mxu0 0.0
    %533 = vmatpush.msra.mxu0 0.0
    %534 = vmatpush.msra.mxu0 0.0
    %535 = vmatpush.msra.mxu0 0.0
    %536 = vmatpush.msra.mxu0 0.0
    %537 = vmatpush.msra.mxu0 0.0
    %538 = vmatpush.msra.mxu0 0.0
    %539 = vmatpush.msra.mxu0 %v309
    %540 = vmatpush.msra.mxu0 %v308
    %541 = vmatpush.msra.mxu0 %v307
    %542 = vmatpush.msra.mxu0 %v306
    %543 = vmatmul.f32.gmra.mxu0 %v525
    %v544 = vpop.f32.mrf.mxu0
    %v545 = vadd.f32 0.0, %v544
    %546 = vdwg.mxu0
    %v547 = vadd.f32 %v297, %v545
    %v548 = vxor.u32 %v547, 2147483648
    %v549 = vmul.f32 %v548, 1.442695
    %v550 = vpow.pop %v549
    %v551 = vadd.f32 %v550, 1.0
    %v552 = vrcp.pop %v551
    %v553 = vmul.f32 %v551, %v552
    %v554 = vsub.f32 1.0, %v553
    %v555 = vmul.f32 %v552, %v554
    %v556 = vadd.f32 %v552, %v555
    %vm557 = vweird.f32 %v551
    %vm558 = vweird.f32 %v552
    %vm559 = vmor %vm557, %vm558
    %v560 = vsel %vm559, %v552, %v556
    %v561 = vand.u32 2147483647, %v551
    %vm562 = vcmp.eq.f32.partialorder %v561, 8.507059e+37
    %v563 = vand.u32 %v551, 2147483648
    %v564 = vor.u32 1.1754944e-38, %v563
    %v565 = vsel %vm562, %v564, %v560
    %v566 = vmul.f32 1.0, %v565
    %v567 = vadd.f32 %v545, %v432
    %569 = vrot.lane.b32.xlu0 %v567, 64
    %v570 = vpop.permute.xlu0 %569
    %v572 = vmul.f32 %v566, %v570
    %574 = vrot.lane.b32.xlu0 %v572, 64
    %v575 = vpop.permute.xlu0 %574
    %v577 = vadd.f32 %v297, %v575
    %v578 = vtanh.pop %v577
    %v579 = vsub.f32 1.0, %v566
    %581 = vrot.lane.b32.xlu0 %v578, 96
    %v582 = vpop.permute.xlu0 %581
    %v584 = vmul.f32 %v579, %v582
    %v585 = vmul.f32 %v566, %v456
    %v586 = vadd.f32 %v584, %v585
    %588 = vrot.lane.b32.xlu0 %v521, 96
    %v589 = vpop.permute.xlu0 %588
    %v590 = vsel %vm318, %v589, 0
    %592 = vmatpush.msra.mxu0 0.0
    %593 = vmatpush.msra.mxu0 0.0
    %594 = vmatpush.msra.mxu0 0.0
    %595 = vmatpush.msra.mxu0 0.0
    %596 = vmatpush.msra.mxu0 0.0
    %597 = vmatpush.msra.mxu0 0.0
    %598 = vmatpush.msra.mxu0 0.0
    %599 = vmatpush.msra.mxu0 0.0
    %600 = vmatpush.msra.mxu0 0.0
    %601 = vmatpush.msra.mxu0 0.0
    %602 = vmatpush.msra.mxu0 0.0
    %603 = vmatpush.msra.mxu0 0.0
    %604 = vmatpush.msra.mxu0 %v305
    %605 = vmatpush.msra.mxu0 %v304
    %606 = vmatpush.msra.mxu0 %v303
    %607 = vmatpush.msra.mxu0 %v302
    %608 = vmatmul.f32.gmra.mxu0 %v590
    %v609 = vpop.f32.mrf.mxu0
    %v610 = vadd.f32 0.0, %v609
    %611 = vdwg.mxu0
    %v612 = vadd.f32 %v206, %v610
    %v613 = vxor.u32 %v612, 2147483648
    %v614 = vmul.f32 %v613, 1.442695
    %v615 = vpow.pop %v614
    %v616 = vadd.f32 %v615, 1.0
    %v617 = vrcp.pop %v616
    %v618 = vmul.f32 %v616, %v617
    %v619 = vsub.f32 1.0, %v618
    %v620 = vmul.f32 %v617, %v619
    %v621 = vadd.f32 %v617, %v620
    %vm622 = vweird.f32 %v616
    %vm623 = vweird.f32 %v617
    %vm624 = vmor %vm622, %vm623
    %v625 = vsel %vm624, %v617, %v621
    %v626 = vand.u32 2147483647, %v616
    %vm627 = vcmp.eq.f32.partialorder %v626, 8.507059e+37
    %v628 = vand.u32 %v616, 2147483648
    %v629 = vor.u32 1.1754944e-38, %v628
    %v630 = vsel %vm627, %v629, %v625
    %v631 = vmul.f32 1.0, %v630
    %v632 = vadd.f32 %v610, %v363
    %634 = vrot.lane.b32.xlu0 %v632, 64
    %v635 = vpop.permute.xlu0 %634
    %v637 = vmul.f32 %v631, %v635
    %639 = vrot.lane.b32.xlu0 %v637, 64
    %v640 = vpop.permute.xlu0 %639
    %v642 = vadd.f32 %v206, %v640
    %v643 = vtanh.pop %v642
    %v644 = vsub.f32 1.0, %v631
    %646 = vrot.lane.b32.xlu0 %v643, 96
    %v647 = vpop.permute.xlu0 %646
    %v649 = vmul.f32 %v644, %v647
    %v650 = vmul.f32 %v631, %v521
    %v651 = vadd.f32 %v649, %v650
    %653 = vrot.lane.b32.xlu0 %v586, 96
    %v654 = vpop.permute.xlu0 %653
    %v655 = vsel %vm318, %v654, 0
    %657 = vmatpush.msra.mxu0 0.0
    %658 = vmatpush.msra.mxu0 0.0
    %659 = vmatpush.msra.mxu0 0.0
    %660 = vmatpush.msra.mxu0 0.0
    %661 = vmatpush.msra.mxu0 0.0
    %662 = vmatpush.msra.mxu0 0.0
    %663 = vmatpush.msra.mxu0 0.0
    %664 = vmatpush.msra.mxu0 0.0
    %665 = vmatpush.msra.mxu0 0.0
    %666 = vmatpush.msra.mxu0 0.0
    %667 = vmatpush.msra.mxu0 0.0
    %668 = vmatpush.msra.mxu0 0.0
    %669 = vmatpush.msra.mxu0 %v309
    %670 = vmatpush.msra.mxu0 %v308
    %671 = vmatpush.msra.mxu0 %v307
    %672 = vmatpush.msra.mxu0 %v306
    %673 = vmatmul.f32.gmra.mxu0 %v655
    %v674 = vpop.f32.mrf.mxu0
    %v675 = vadd.f32 0.0, %v674
    %676 = vdwg.mxu0
    %v677 = vadd.f32 %v294, %v675
    %v678 = vxor.u32 %v677, 2147483648
    %v679 = vmul.f32 %v678, 1.442695
    %v680 = vpow.pop %v679
    %v681 = vadd.f32 %v680, 1.0
    %v682 = vrcp.pop %v681
    %v683 = vmul.f32 %v681, %v682
    %v684 = vsub.f32 1.0, %v683
    %v685 = vmul.f32 %v682, %v684
    %v686 = vadd.f32 %v682, %v685
    %vm687 = vweird.f32 %v681
    %vm688 = vweird.f32 %v682
    %vm689 = vmor %vm687, %vm688
    %v690 = vsel %vm689, %v682, %v686
    %v691 = vand.u32 2147483647, %v681
    %vm692 = vcmp.eq.f32.partialorder %v691, 8.507059e+37
    %v693 = vand.u32 %v681, 2147483648
    %v694 = vor.u32 1.1754944e-38, %v693
    %v695 = vsel %vm692, %v694, %v690
    %v696 = vmul.f32 1.0, %v695
    %v697 = vadd.f32 %v675, %v432
    %699 = vrot.lane.b32.xlu0 %v697, 64
    %v700 = vpop.permute.xlu0 %699
    %v702 = vmul.f32 %v696, %v700
    %704 = vrot.lane.b32.xlu0 %v702, 64
    %v705 = vpop.permute.xlu0 %704
    %v707 = vadd.f32 %v294, %v705
    %v708 = vtanh.pop %v707
    %v709 = vsub.f32 1.0, %v696
    %711 = vrot.lane.b32.xlu0 %v708, 96
    %v712 = vpop.permute.xlu0 %711
    %v714 = vmul.f32 %v709, %v712
    %v715 = vmul.f32 %v696, %v586
    %v716 = vadd.f32 %v714, %v715
    %718 = vrot.lane.b32.xlu0 %v651, 96
    %v719 = vpop.permute.xlu0 %718
    %v720 = vsel %vm318, %v719, 0
    %722 = vmatpush.msra.mxu0 0.0
    %723 = vmatpush.msra.mxu0 0.0
    %724 = vmatpush.msra.mxu0 0.0
    %725 = vmatpush.msra.mxu0 0.0
    %726 = vmatpush.msra.mxu0 0.0
    %727 = vmatpush.msra.mxu0 0.0
    %728 = vmatpush.msra.mxu0 0.0
    %729 = vmatpush.msra.mxu0 0.0
    %730 = vmatpush.msra.mxu0 0.0
    %731 = vmatpush.msra.mxu0 0.0
    %732 = vmatpush.msra.mxu0 0.0
    %733 = vmatpush.msra.mxu0 0.0
    %734 = vmatpush.msra.mxu0 %v305
    %735 = vmatpush.msra.mxu0 %v304
    %736 = vmatpush.msra.mxu0 %v303
    %737 = vmatpush.msra.mxu0 %v302
    %738 = vmatmul.f32.gmra.mxu0 %v720
    %v739 = vpop.f32.mrf.mxu0
    %v740 = vadd.f32 0.0, %v739
    %741 = vdwg.mxu0
    %v742 = vadd.f32 %v209, %v740
    %v743 = vxor.u32 %v742, 2147483648
    %v744 = vmul.f32 %v743, 1.442695
    %v745 = vpow.pop %v744
    %v746 = vadd.f32 %v745, 1.0
    %v747 = vrcp.pop %v746
    %v748 = vmul.f32 %v746, %v747
    %v749 = vsub.f32 1.0, %v748
    %v750 = vmul.f32 %v747, %v749
    %v751 = vadd.f32 %v747, %v750
    %vm752 = vweird.f32 %v746
    %vm753 = vweird.f32 %v747
    %vm754 = vmor %vm752, %vm753
    %v755 = vsel %vm754, %v747, %v751
    %v756 = vand.u32 2147483647, %v746
    %vm757 = vcmp.eq.f32.partialorder %v756, 8.507059e+37
    %v758 = vand.u32 %v746, 2147483648
    %v759 = vor.u32 1.1754944e-38, %v758
    %v760 = vsel %vm757, %v759, %v755
    %v761 = vmul.f32 1.0, %v760
    %v762 = vadd.f32 %v740, %v363
    %764 = vrot.lane.b32.xlu0 %v762, 64
    %v765 = vpop.permute.xlu0 %764
    %v767 = vmul.f32 %v761, %v765
    %769 = vrot.lane.b32.xlu0 %v767, 64
    %v770 = vpop.permute.xlu0 %769
    %v772 = vadd.f32 %v209, %v770
    %v773 = vtanh.pop %v772
    %v774 = vsub.f32 1.0, %v761
    %776 = vrot.lane.b32.xlu0 %v773, 96
    %v777 = vpop.permute.xlu0 %776
    %v779 = vmul.f32 %v774, %v777
    %v780 = vmul.f32 %v761, %v651
    %v781 = vadd.f32 %v779, %v780
    %783 = vrot.lane.b32.xlu0 %v716, 96
    %v784 = vpop.permute.xlu0 %783
    %v785 = vsel %vm318, %v784, 0
    %787 = vmatpush.msra.mxu0 0.0
    %788 = vmatpush.msra.mxu0 0.0
    %789 = vmatpush.msra.mxu0 0.0
    %790 = vmatpush.msra.mxu0 0.0
    %791 = vmatpush.msra.mxu0 0.0
    %792 = vmatpush.msra.mxu0 0.0
    %793 = vmatpush.msra.mxu0 0.0
    %794 = vmatpush.msra.mxu0 0.0
    %795 = vmatpush.msra.mxu0 0.0
    %796 = vmatpush.msra.mxu0 0.0
    %797 = vmatpush.msra.mxu0 0.0
    %798 = vmatpush.msra.mxu0 0.0
    %799 = vmatpush.msra.mxu0 %v309
    %800 = vmatpush.msra.mxu0 %v308
    %801 = vmatpush.msra.mxu0 %v307
    %802 = vmatpush.msra.mxu0 %v306
    %803 = vmatmul.f32.gmra.mxu0 %v785
    %v804 = vpop.f32.mrf.mxu0
    %v805 = vadd.f32 0.0, %v804
    %806 = vdwg.mxu0
    %v807 = vadd.f32 %v291, %v805
    %v808 = vxor.u32 %v807, 2147483648
    %v809 = vmul.f32 %v808, 1.442695
    %v810 = vpow.pop %v809
    %v811 = vadd.f32 %v810, 1.0
    %v812 = vrcp.pop %v811
    %v813 = vmul.f32 %v811, %v812
    %v814 = vsub.f32 1.0, %v813
    %v815 = vmul.f32 %v812, %v814
    %v816 = vadd.f32 %v812, %v815
    %vm817 = vweird.f32 %v811
    %vm818 = vweird.f32 %v812
    %vm819 = vmor %vm817, %vm818
    %v820 = vsel %vm819, %v812, %v816
    %v821 = vand.u32 2147483647, %v811
    %vm822 = vcmp.eq.f32.partialorder %v821, 8.507059e+37
    %v823 = vand.u32 %v811, 2147483648
    %v824 = vor.u32 1.1754944e-38, %v823
    %v825 = vsel %vm822, %v824, %v820
    %v826 = vmul.f32 1.0, %v825
    %v827 = vadd.f32 %v805, %v432
    %829 = vrot.lane.b32.xlu0 %v827, 64
    %v830 = vpop.permute.xlu0 %829
    %v832 = vmul.f32 %v826, %v830
    %834 = vrot.lane.b32.xlu0 %v832, 64
    %v835 = vpop.permute.xlu0 %834
    %v837 = vadd.f32 %v291, %v835
    %v838 = vtanh.pop %v837
    %v839 = vsub.f32 1.0, %v826
    %841 = vrot.lane.b32.xlu0 %v838, 96
    %v842 = vpop.permute.xlu0 %841
    %v844 = vmul.f32 %v839, %v842
    %v845 = vmul.f32 %v826, %v716
    %v846 = vadd.f32 %v844, %v845
    %848 = vrot.lane.b32.xlu0 %v781, 96
    %v849 = vpop.permute.xlu0 %848
    %v850 = vsel %vm318, %v849, 0
    %852 = vmatpush.msra.mxu0 0.0
    %853 = vmatpush.msra.mxu0 0.0
    %854 = vmatpush.msra.mxu0 0.0
    %855 = vmatpush.msra.mxu0 0.0
    %856 = vmatpush.msra.mxu0 0.0
    %857 = vmatpush.msra.mxu0 0.0
    %858 = vmatpush.msra.mxu0 0.0
    %859 = vmatpush.msra.mxu0 0.0
    %860 = vmatpush.msra.mxu0 0.0
    %861 = vmatpush.msra.mxu0 0.0
    %862 = vmatpush.msra.mxu0 0.0
    %863 = vmatpush.msra.mxu0 0.0
    %864 = vmatpush.msra.mxu0 %v305
    %865 = vmatpush.msra.mxu0 %v304
    %866 = vmatpush.msra.mxu0 %v303
    %867 = vmatpush.msra.mxu0 %v302
    %868 = vmatmul.f32.gmra.mxu0 %v850
    %v869 = vpop.f32.mrf.mxu0
    %v870 = vadd.f32 0.0, %v869
    %871 = vdwg.mxu0
    %v872 = vadd.f32 %v212, %v870
    %v873 = vxor.u32 %v872, 2147483648
    %v874 = vmul.f32 %v873, 1.442695
    %v875 = vpow.pop %v874
    %v876 = vadd.f32 %v875, 1.0
    %v877 = vrcp.pop %v876
    %v878 = vmul.f32 %v876, %v877
    %v879 = vsub.f32 1.0, %v878
    %v880 = vmul.f32 %v877, %v879
    %v881 = vadd.f32 %v877, %v880
    %vm882 = vweird.f32 %v876
    %vm883 = vweird.f32 %v877
    %vm884 = vmor %vm882, %vm883
    %v885 = vsel %vm884, %v877, %v881
    %v886 = vand.u32 2147483647, %v876
    %vm887 = vcmp.eq.f32.partialorder %v886, 8.507059e+37
    %v888 = vand.u32 %v876, 2147483648
    %v889 = vor.u32 1.1754944e-38, %v888
    %v890 = vsel %vm887, %v889, %v885
    %v891 = vmul.f32 1.0, %v890
    %v892 = vadd.f32 %v870, %v363
    %894 = vrot.lane.b32.xlu0 %v892, 64
    %v895 = vpop.permute.xlu0 %894
    %v897 = vmul.f32 %v891, %v895
    %899 = vrot.lane.b32.xlu0 %v897, 64
    %v900 = vpop.permute.xlu0 %899
    %v902 = vadd.f32 %v212, %v900
    %v903 = vtanh.pop %v902
    %v904 = vsub.f32 1.0, %v891
    %906 = vrot.lane.b32.xlu0 %v903, 96
    %v907 = vpop.permute.xlu0 %906
    %v909 = vmul.f32 %v904, %v907
    %v910 = vmul.f32 %v891, %v781
    %v911 = vadd.f32 %v909, %v910
    %913 = vrot.lane.b32.xlu0 %v846, 96
    %v914 = vpop.permute.xlu0 %913
    %v915 = vsel %vm318, %v914, 0
    %917 = vmatpush.msra.mxu0 0.0
    %918 = vmatpush.msra.mxu0 0.0
    %919 = vmatpush.msra.mxu0 0.0
    %920 = vmatpush.msra.mxu0 0.0
    %921 = vmatpush.msra.mxu0 0.0
    %922 = vmatpush.msra.mxu0 0.0
    %923 = vmatpush.msra.mxu0 0.0
    %924 = vmatpush.msra.mxu0 0.0
    %925 = vmatpush.msra.mxu0 0.0
    %926 = vmatpush.msra.mxu0 0.0
    %927 = vmatpush.msra.mxu0 0.0
    %928 = vmatpush.msra.mxu0 0.0
    %929 = vmatpush.msra.mxu0 %v309
    %930 = vmatpush.msra.mxu0 %v308
    %931 = vmatpush.msra.mxu0 %v307
    %932 = vmatpush.msra.mxu0 %v306
    %933 = vmatmul.f32.gmra.mxu0 %v915
    %v934 = vpop.f32.mrf.mxu0
    %v935 = vadd.f32 0.0, %v934
    %936 = vdwg.mxu0
    %v937 = vadd.f32 %v288, %v935
    %v938 = vxor.u32 %v937, 2147483648
    %v939 = vmul.f32 %v938, 1.442695
    %v940 = vpow.pop %v939
    %v941 = vadd.f32 %v940, 1.0
    %v942 = vrcp.pop %v941
    %v943 = vmul.f32 %v941, %v942
    %v944 = vsub.f32 1.0, %v943
    %v945 = vmul.f32 %v942, %v944
    %v946 = vadd.f32 %v942, %v945
    %vm947 = vweird.f32 %v941
    %vm948 = vweird.f32 %v942
    %vm949 = vmor %vm947, %vm948
    %v950 = vsel %vm949, %v942, %v946
    %v951 = vand.u32 2147483647, %v941
    %vm952 = vcmp.eq.f32.partialorder %v951, 8.507059e+37
    %v953 = vand.u32 %v941, 2147483648
    %v954 = vor.u32 1.1754944e-38, %v953
    %v955 = vsel %vm952, %v954, %v950
    %v956 = vmul.f32 1.0, %v955
    %v957 = vadd.f32 %v935, %v432
    %959 = vrot.lane.b32.xlu0 %v957, 64
    %v960 = vpop.permute.xlu0 %959
    %v962 = vmul.f32 %v956, %v960
    %964 = vrot.lane.b32.xlu0 %v962, 64
    %v965 = vpop.permute.xlu0 %964
    %v967 = vadd.f32 %v288, %v965
    %v968 = vtanh.pop %v967
    %v969 = vsub.f32 1.0, %v956
    %971 = vrot.lane.b32.xlu0 %v968, 96
    %v972 = vpop.permute.xlu0 %971
    %v974 = vmul.f32 %v969, %v972
    %v975 = vmul.f32 %v956, %v846
    %v976 = vadd.f32 %v974, %v975
    %978 = vrot.lane.b32.xlu0 %v911, 96
    %v979 = vpop.permute.xlu0 %978
    %v980 = vsel %vm318, %v979, 0
    %982 = vmatpush.msra.mxu0 0.0
    %983 = vmatpush.msra.mxu0 0.0
    %984 = vmatpush.msra.mxu0 0.0
    %985 = vmatpush.msra.mxu0 0.0
    %986 = vmatpush.msra.mxu0 0.0
    %987 = vmatpush.msra.mxu0 0.0
    %988 = vmatpush.msra.mxu0 0.0
    %989 = vmatpush.msra.mxu0 0.0
    %990 = vmatpush.msra.mxu0 0.0
    %991 = vmatpush.msra.mxu0 0.0
    %992 = vmatpush.msra.mxu0 0.0
    %993 = vmatpush.msra.mxu0 0.0
    %994 = vmatpush.msra.mxu0 %v305
    %995 = vmatpush.msra.mxu0 %v304
    %996 = vmatpush.msra.mxu0 %v303
    %997 = vmatpush.msra.mxu0 %v302
    %998 = vmatmul.f32.gmra.mxu0 %v980
    %v999 = vpop.f32.mrf.mxu0
    %v1000 = vadd.f32 0.0, %v999
    %1001 = vdwg.mxu0
    %v1002 = vadd.f32 %v215, %v1000
    %v1003 = vxor.u32 %v1002, 2147483648
    %v1004 = vmul.f32 %v1003, 1.442695
    %v1005 = vpow.pop %v1004
    %v1006 = vadd.f32 %v1005, 1.0
    %v1007 = vrcp.pop %v1006
    %v1008 = vmul.f32 %v1006, %v1007
    %v1009 = vsub.f32 1.0, %v1008
    %v1010 = vmul.f32 %v1007, %v1009
    %v1011 = vadd.f32 %v1007, %v1010
    %vm1012 = vweird.f32 %v1006
    %vm1013 = vweird.f32 %v1007
    %vm1014 = vmor %vm1012, %vm1013
    %v1015 = vsel %vm1014, %v1007, %v1011
    %v1016 = vand.u32 2147483647, %v1006
    %vm1017 = vcmp.eq.f32.partialorder %v1016, 8.507059e+37
    %v1018 = vand.u32 %v1006, 2147483648
    %v1019 = vor.u32 1.1754944e-38, %v1018
    %v1020 = vsel %vm1017, %v1019, %v1015
    %v1021 = vmul.f32 1.0, %v1020
    %v1022 = vadd.f32 %v1000, %v363
    %1024 = vrot.lane.b32.xlu0 %v1022, 64
    %v1025 = vpop.permute.xlu0 %1024
    %v1027 = vmul.f32 %v1021, %v1025
    %1029 = vrot.lane.b32.xlu0 %v1027, 64
    %v1030 = vpop.permute.xlu0 %1029
    %v1032 = vadd.f32 %v215, %v1030
    %v1033 = vtanh.pop %v1032
    %v1034 = vsub.f32 1.0, %v1021
    %1036 = vrot.lane.b32.xlu0 %v1033, 96
    %v1037 = vpop.permute.xlu0 %1036
    %v1039 = vmul.f32 %v1034, %v1037
    %v1040 = vmul.f32 %v1021, %v911
    %v1041 = vadd.f32 %v1039, %v1040
    %1043 = vrot.lane.b32.xlu0 %v976, 96
    %v1044 = vpop.permute.xlu0 %1043
    %v1045 = vsel %vm318, %v1044, 0
    %1047 = vmatpush.msra.mxu0 0.0
    %1048 = vmatpush.msra.mxu0 0.0
    %1049 = vmatpush.msra.mxu0 0.0
    %1050 = vmatpush.msra.mxu0 0.0
    %1051 = vmatpush.msra.mxu0 0.0
    %1052 = vmatpush.msra.mxu0 0.0
    %1053 = vmatpush.msra.mxu0 0.0
    %1054 = vmatpush.msra.mxu0 0.0
    %1055 = vmatpush.msra.mxu0 0.0
    %1056 = vmatpush.msra.mxu0 0.0
    %1057 = vmatpush.msra.mxu0 0.0
    %1058 = vmatpush.msra.mxu0 0.0
    %1059 = vmatpush.msra.mxu0 %v309
    %1060 = vmatpush.msra.mxu0 %v308
    %1061 = vmatpush.msra.mxu0 %v307
    %1062 = vmatpush.msra.mxu0 %v306
    %1063 = vmatmul.f32.gmra.mxu0 %v1045
    %v1064 = vpop.f32.mrf.mxu0
    %v1065 = vadd.f32 0.0, %v1064
    %1066 = vdwg.mxu0
    %v1067 = vadd.f32 %v285, %v1065
    %v1068 = vxor.u32 %v1067, 2147483648
    %v1069 = vmul.f32 %v1068, 1.442695
    %v1070 = vpow.pop %v1069
    %v1071 = vadd.f32 %v1070, 1.0
    %v1072 = vrcp.pop %v1071
    %v1073 = vmul.f32 %v1071, %v1072
    %v1074 = vsub.f32 1.0, %v1073
    %v1075 = vmul.f32 %v1072, %v1074
    %v1076 = vadd.f32 %v1072, %v1075
    %vm1077 = vweird.f32 %v1071
    %vm1078 = vweird.f32 %v1072
    %vm1079 = vmor %vm1077, %vm1078
    %v1080 = vsel %vm1079, %v1072, %v1076
    %v1081 = vand.u32 2147483647, %v1071
    %vm1082 = vcmp.eq.f32.partialorder %v1081, 8.507059e+37
    %v1083 = vand.u32 %v1071, 2147483648
    %v1084 = vor.u32 1.1754944e-38, %v1083
    %v1085 = vsel %vm1082, %v1084, %v1080
    %v1086 = vmul.f32 1.0, %v1085
    %v1087 = vadd.f32 %v1065, %v432
    %1089 = vrot.lane.b32.xlu0 %v1087, 64
    %v1090 = vpop.permute.xlu0 %1089
    %v1092 = vmul.f32 %v1086, %v1090
    %1094 = vrot.lane.b32.xlu0 %v1092, 64
    %v1095 = vpop.permute.xlu0 %1094
    %v1097 = vadd.f32 %v285, %v1095
    %v1098 = vtanh.pop %v1097
    %v1099 = vsub.f32 1.0, %v1086
    %1101 = vrot.lane.b32.xlu0 %v1098, 96
    %v1102 = vpop.permute.xlu0 %1101
    %v1104 = vmul.f32 %v1099, %v1102
    %v1105 = vmul.f32 %v1086, %v976
    %v1106 = vadd.f32 %v1104, %v1105
    %1108 = vrot.lane.b32.xlu0 %v1041, 96
    %v1109 = vpop.permute.xlu0 %1108
    %v1110 = vsel %vm318, %v1109, 0
    %1112 = vmatpush.msra.mxu0 0.0
    %1113 = vmatpush.msra.mxu0 0.0
    %1114 = vmatpush.msra.mxu0 0.0
    %1115 = vmatpush.msra.mxu0 0.0
    %1116 = vmatpush.msra.mxu0 0.0
    %1117 = vmatpush.msra.mxu0 0.0
    %1118 = vmatpush.msra.mxu0 0.0
    %1119 = vmatpush.msra.mxu0 0.0
    %1120 = vmatpush.msra.mxu0 0.0
    %1121 = vmatpush.msra.mxu0 0.0
    %1122 = vmatpush.msra.mxu0 0.0
    %1123 = vmatpush.msra.mxu0 0.0
    %1124 = vmatpush.msra.mxu0 %v305
    %1125 = vmatpush.msra.mxu0 %v304
    %1126 = vmatpush.msra.mxu0 %v303
    %1127 = vmatpush.msra.mxu0 %v302
    %1128 = vmatmul.f32.gmra.mxu0 %v1110
    %v1129 = vpop.f32.mrf.mxu0
    %v1130 = vadd.f32 0.0, %v1129
    %1131 = vdwg.mxu0
    %v1132 = vadd.f32 %v218, %v1130
    %v1133 = vxor.u32 %v1132, 2147483648
    %v1134 = vmul.f32 %v1133, 1.442695
    %v1135 = vpow.pop %v1134
    %v1136 = vadd.f32 %v1135, 1.0
    %v1137 = vrcp.pop %v1136
    %v1138 = vmul.f32 %v1136, %v1137
    %v1139 = vsub.f32 1.0, %v1138
    %v1140 = vmul.f32 %v1137, %v1139
    %v1141 = vadd.f32 %v1137, %v1140
    %vm1142 = vweird.f32 %v1136
    %vm1143 = vweird.f32 %v1137
    %vm1144 = vmor %vm1142, %vm1143
    %v1145 = vsel %vm1144, %v1137, %v1141
    %v1146 = vand.u32 2147483647, %v1136
    %vm1147 = vcmp.eq.f32.partialorder %v1146, 8.507059e+37
    %v1148 = vand.u32 %v1136, 2147483648
    %v1149 = vor.u32 1.1754944e-38, %v1148
    %v1150 = vsel %vm1147, %v1149, %v1145
    %v1151 = vmul.f32 1.0, %v1150
    %v1152 = vadd.f32 %v1130, %v363
    %1154 = vrot.lane.b32.xlu0 %v1152, 64
    %v1155 = vpop.permute.xlu0 %1154
    %v1157 = vmul.f32 %v1151, %v1155
    %1159 = vrot.lane.b32.xlu0 %v1157, 64
    %v1160 = vpop.permute.xlu0 %1159
    %v1162 = vadd.f32 %v218, %v1160
    %v1163 = vtanh.pop %v1162
    %v1164 = vsub.f32 1.0, %v1151
    %1166 = vrot.lane.b32.xlu0 %v1163, 96
    %v1167 = vpop.permute.xlu0 %1166
    %v1169 = vmul.f32 %v1164, %v1167
    %v1170 = vmul.f32 %v1151, %v1041
    %v1171 = vadd.f32 %v1169, %v1170
    %1173 = vrot.lane.b32.xlu0 %v1106, 96
    %v1174 = vpop.permute.xlu0 %1173
    %v1175 = vsel %vm318, %v1174, 0
    %1177 = vmatpush.msra.mxu0 0.0
    %1178 = vmatpush.msra.mxu0 0.0
    %1179 = vmatpush.msra.mxu0 0.0
    %1180 = vmatpush.msra.mxu0 0.0
    %1181 = vmatpush.msra.mxu0 0.0
    %1182 = vmatpush.msra.mxu0 0.0
    %1183 = vmatpush.msra.mxu0 0.0
    %1184 = vmatpush.msra.mxu0 0.0
    %1185 = vmatpush.msra.mxu0 0.0
    %1186 = vmatpush.msra.mxu0 0.0
    %1187 = vmatpush.msra.mxu0 0.0
    %1188 = vmatpush.msra.mxu0 0.0
    %1189 = vmatpush.msra.mxu0 %v309
    %1190 = vmatpush.msra.mxu0 %v308
    %1191 = vmatpush.msra.mxu0 %v307
    %1192 = vmatpush.msra.mxu0 %v306
    %1193 = vmatmul.f32.gmra.mxu0 %v1175
    %v1194 = vpop.f32.mrf.mxu0
    %v1195 = vadd.f32 0.0, %v1194
    %1196 = vdwg.mxu0
    %v1197 = vadd.f32 %v282, %v1195
    %v1198 = vxor.u32 %v1197, 2147483648
    %v1199 = vmul.f32 %v1198, 1.442695
    %v1200 = vpow.pop %v1199
    %v1201 = vadd.f32 %v1200, 1.0
    %v1202 = vrcp.pop %v1201
    %v1203 = vmul.f32 %v1201, %v1202
    %v1204 = vsub.f32 1.0, %v1203
    %v1205 = vmul.f32 %v1202, %v1204
    %v1206 = vadd.f32 %v1202, %v1205
    %vm1207 = vweird.f32 %v1201
    %vm1208 = vweird.f32 %v1202
    %vm1209 = vmor %vm1207, %vm1208
    %v1210 = vsel %vm1209, %v1202, %v1206
    %v1211 = vand.u32 2147483647, %v1201
    %vm1212 = vcmp.eq.f32.partialorder %v1211, 8.507059e+37
    %v1213 = vand.u32 %v1201, 2147483648
    %v1214 = vor.u32 1.1754944e-38, %v1213
    %v1215 = vsel %vm1212, %v1214, %v1210
    %v1216 = vmul.f32 1.0, %v1215
    %v1217 = vadd.f32 %v1195, %v432
    %1219 = vrot.lane.b32.xlu0 %v1217, 64
    %v1220 = vpop.permute.xlu0 %1219
    %v1222 = vmul.f32 %v1216, %v1220
    %1224 = vrot.lane.b32.xlu0 %v1222, 64
    %v1225 = vpop.permute.xlu0 %1224
    %v1227 = vadd.f32 %v282, %v1225
    %v1228 = vtanh.pop %v1227
    %v1229 = vsub.f32 1.0, %v1216
    %1231 = vrot.lane.b32.xlu0 %v1228, 96
    %v1232 = vpop.permute.xlu0 %1231
    %v1234 = vmul.f32 %v1229, %v1232
    %v1235 = vmul.f32 %v1216, %v1106
    %v1236 = vadd.f32 %v1234, %v1235
    %1238 = vrot.lane.b32.xlu0 %v1171, 96
    %v1239 = vpop.permute.xlu0 %1238
    %v1240 = vsel %vm318, %v1239, 0
    %1242 = vmatpush.msra.mxu0 0.0
    %1243 = vmatpush.msra.mxu0 0.0
    %1244 = vmatpush.msra.mxu0 0.0
    %1245 = vmatpush.msra.mxu0 0.0
    %1246 = vmatpush.msra.mxu0 0.0
    %1247 = vmatpush.msra.mxu0 0.0
    %1248 = vmatpush.msra.mxu0 0.0
    %1249 = vmatpush.msra.mxu0 0.0
    %1250 = vmatpush.msra.mxu0 0.0
    %1251 = vmatpush.msra.mxu0 0.0
    %1252 = vmatpush.msra.mxu0 0.0
    %1253 = vmatpush.msra.mxu0 0.0
    %1254 = vmatpush.msra.mxu0 %v305
    %1255 = vmatpush.msra.mxu0 %v304
    %1256 = vmatpush.msra.mxu0 %v303
    %1257 = vmatpush.msra.mxu0 %v302
    %1258 = vmatmul.f32.gmra.mxu0 %v1240
    %v1259 = vpop.f32.mrf.mxu0
    %v1260 = vadd.f32 0.0, %v1259
    %1261 = vdwg.mxu0
    %v1262 = vadd.f32 %v221, %v1260
    %v1263 = vxor.u32 %v1262, 2147483648
    %v1264 = vmul.f32 %v1263, 1.442695
    %v1265 = vpow.pop %v1264
    %v1266 = vadd.f32 %v1265, 1.0
    %v1267 = vrcp.pop %v1266
    %v1268 = vmul.f32 %v1266, %v1267
    %v1269 = vsub.f32 1.0, %v1268
    %v1270 = vmul.f32 %v1267, %v1269
    %v1271 = vadd.f32 %v1267, %v1270
    %vm1272 = vweird.f32 %v1266
    %vm1273 = vweird.f32 %v1267
    %vm1274 = vmor %vm1272, %vm1273
    %v1275 = vsel %vm1274, %v1267, %v1271
    %v1276 = vand.u32 2147483647, %v1266
    %vm1277 = vcmp.eq.f32.partialorder %v1276, 8.507059e+37
    %v1278 = vand.u32 %v1266, 2147483648
    %v1279 = vor.u32 1.1754944e-38, %v1278
    %v1280 = vsel %vm1277, %v1279, %v1275
    %v1281 = vmul.f32 1.0, %v1280
    %v1282 = vadd.f32 %v1260, %v363
    %1284 = vrot.lane.b32.xlu0 %v1282, 64
    %v1285 = vpop.permute.xlu0 %1284
    %v1287 = vmul.f32 %v1281, %v1285
    %1289 = vrot.lane.b32.xlu0 %v1287, 64
    %v1290 = vpop.permute.xlu0 %1289
    %v1292 = vadd.f32 %v221, %v1290
    %v1293 = vtanh.pop %v1292
    %v1294 = vsub.f32 1.0, %v1281
    %1296 = vrot.lane.b32.xlu0 %v1293, 96
    %v1297 = vpop.permute.xlu0 %1296
    %v1299 = vmul.f32 %v1294, %v1297
    %v1300 = vmul.f32 %v1281, %v1171
    %v1301 = vadd.f32 %v1299, %v1300
    %1303 = vrot.lane.b32.xlu0 %v1236, 96
    %v1304 = vpop.permute.xlu0 %1303
    %v1305 = vsel %vm318, %v1304, 0
    %1307 = vmatpush.msra.mxu0 0.0
    %1308 = vmatpush.msra.mxu0 0.0
    %1309 = vmatpush.msra.mxu0 0.0
    %1310 = vmatpush.msra.mxu0 0.0
    %1311 = vmatpush.msra.mxu0 0.0
    %1312 = vmatpush.msra.mxu0 0.0
    %1313 = vmatpush.msra.mxu0 0.0
    %1314 = vmatpush.msra.mxu0 0.0
    %1315 = vmatpush.msra.mxu0 0.0
    %1316 = vmatpush.msra.mxu0 0.0
    %1317 = vmatpush.msra.mxu0 0.0
    %1318 = vmatpush.msra.mxu0 0.0
    %1319 = vmatpush.msra.mxu0 %v309
    %1320 = vmatpush.msra.mxu0 %v308
    %1321 = vmatpush.msra.mxu0 %v307
    %1322 = vmatpush.msra.mxu0 %v306
    %1323 = vmatmul.f32.gmra.mxu0 %v1305
    %v1324 = vpop.f32.mrf.mxu0
    %v1325 = vadd.f32 0.0, %v1324
    %1326 = vdwg.mxu0
    %v1327 = vadd.f32 %v279, %v1325
    %v1328 = vxor.u32 %v1327, 2147483648
    %v1329 = vmul.f32 %v1328, 1.442695
    %v1330 = vpow.pop %v1329
    %v1331 = vadd.f32 %v1330, 1.0
    %v1332 = vrcp.pop %v1331
    %v1333 = vmul.f32 %v1331, %v1332
    %v1334 = vsub.f32 1.0, %v1333
    %v1335 = vmul.f32 %v1332, %v1334
    %v1336 = vadd.f32 %v1332, %v1335
    %vm1337 = vweird.f32 %v1331
    %vm1338 = vweird.f32 %v1332
    %vm1339 = vmor %vm1337, %vm1338
    %v1340 = vsel %vm1339, %v1332, %v1336
    %v1341 = vand.u32 2147483647, %v1331
    %vm1342 = vcmp.eq.f32.partialorder %v1341, 8.507059e+37
    %v1343 = vand.u32 %v1331, 2147483648
    %v1344 = vor.u32 1.1754944e-38, %v1343
    %v1345 = vsel %vm1342, %v1344, %v1340
    %v1346 = vmul.f32 1.0, %v1345
    %v1347 = vadd.f32 %v1325, %v432
    %1349 = vrot.lane.b32.xlu0 %v1347, 64
    %v1350 = vpop.permute.xlu0 %1349
    %v1352 = vmul.f32 %v1346, %v1350
    %1354 = vrot.lane.b32.xlu0 %v1352, 64
    %v1355 = vpop.permute.xlu0 %1354
    %v1357 = vadd.f32 %v279, %v1355
    %v1358 = vtanh.pop %v1357
    %v1359 = vsub.f32 1.0, %v1346
    %1361 = vrot.lane.b32.xlu0 %v1358, 96
    %v1362 = vpop.permute.xlu0 %1361
    %v1364 = vmul.f32 %v1359, %v1362
    %v1365 = vmul.f32 %v1346, %v1236
    %v1366 = vadd.f32 %v1364, %v1365
    %1368 = vrot.lane.b32.xlu0 %v1301, 96
    %v1369 = vpop.permute.xlu0 %1368
    %1371 = vst.msk [vmem:[#allocation2] sm:$0xff] %vm318, %v1369
    %1373 = vrot.lane.b32.xlu0 %v1366, 96
    %v1374 = vpop.permute.xlu0 %1373
    %1376 = vst.msk [vmem:[#allocation3] sm:$0xff] %vm318, %v1374
    // Predicated region
    $region70: #{tpu_custom_call.1} parent=1 // pred_check
      %p1377 = pneg %p136
    $region71: #{tpu_custom_call.1} parent=1 // pred_check_branch
      %1379 = sbr.rel (%p1377) target = $region73
    $region72: #{tpu_custom_call.1} parent=1 // pred_region
      %v1380 = vsel %vm318, %v1369, %v1366
      %vm1381 = vcmask 523264
      %1382 = vst.msk [vmem:[#allocation15] sm:$0xff] %vm1381, %v1380
    $region73: #{tpu_custom_call.1} parent=1 // pred_fallthru
      _
    // Predicated region
    $region74: #{tpu_custom_call.1} parent=1 // pred_check
      _
    $region75: #{tpu_custom_call.1} parent=1 // pred_check_branch
      %1384 = sbr.rel (0) target = $region77
    $region76: #{tpu_custom_call.1} parent=1 // pred_region
      %1386 = vsyncadd [#allocation6], 0
      %s1388 = sshll.u32 [#allocation15], 4
      %s1389 = int_to_ptr.vmem [resolvable:$true] %s1388
      %s1390 = sshll.u32 %s10, 4
      %s1391 = int_to_ptr.hbm [resolvable:$true] %s1390
      %1393 = dma.vmem_to_hbm [thread:$0]  %s1389, 128, %s1391, [#allocation6]
    $region77: #{tpu_custom_call.1} parent=1 // pred_fallthru
      _
    // Predicated region
    $region78: #{tpu_custom_call.1} parent=1 // pred_check
      _
    $region79: #{tpu_custom_call.1} parent=1 // pred_check_branch
      %1395 = sbr.rel (0) target = $region81
    $region80: #{tpu_custom_call.1} parent=1 // pred_region
      %1397 = dma.done [#allocation6], 128
    $region81: #{tpu_custom_call.1} parent=1 // pred_fallthru
      _
    %1398 = vsyncpa [#allocation5], 1
    %1399 = vsyncpa [#allocation8], 1
    %1400 = vsyncpa [#allocation11], 1
    %1401 = vsyncpa [#allocation14], 1
    %1402 = vsyncpa [#allocation6], 1

</llo_original>
